<compile_context>
chip_gen: v7x
topology: tpu7x:2x2x1
jax: 0.10.0
libtpu: 0.0.40
codegen_flags: <defaults>
</compile_context>

<pallas_src>
import jax
import jax.numpy as jnp
from jax import lax
from jax.experimental import pallas as pl
from jax.experimental.pallas import tpu as pltpu


def up_kernel(x_ref, res_ref, pe_ref, po_ref, wup_ref, bup_ref,
              w1u_ref, w1r_ref, b1_ref, w2_ref, b2_ref, o_ref):
    f32 = jnp.float32
    Nb, Cin, L = x_ref.shape
    T = res_ref.shape[2]                         # T == 2 * L

    # Fold the Nb batch elements of this grid step onto the lane axis.
    # L and T are multiples of 128, so these are aligned lane concats (cheap).
    def fold(ref):
        if Nb == 1:
            return ref[0].astype(f32)
        return jnp.concatenate([ref[n].astype(f32) for n in range(Nb)], axis=1)

    x = fold(x_ref)                              # (Cin,  Nb*L)
    res = fold(res_ref)                          # (Cres, Nb*T)

    # ---- ConvTranspose1d(kernel=2, stride=2): even/odd streams at L resolution ----
    ue = jnp.dot(wup_ref[0], x, preferred_element_type=f32)   # (Cup, Nb*L)  tap k=0
    uo = jnp.dot(wup_ref[1], x, preferred_element_type=f32)   # (Cup, Nb*L)  tap k=1

    # Interleave streams to T resolution per batch element using the HOISTED 0/1
    # scatter matrices (resident in VMEM, DMA'd once for the whole grid).
    pe = pe_ref[...]                             # (L, T): column 2l     <- even stream
    po = po_ref[...]                             # (L, T): column 2l + 1 <- odd  stream
    u_parts = []
    for n in range(Nb):
        sl = slice(n * L, (n + 1) * L)           # static, 128-aligned lane slice
        u_parts.append(jnp.dot(ue[:, sl], pe, preferred_element_type=f32)
                       + jnp.dot(uo[:, sl], po, preferred_element_type=f32))
    u = u_parts[0] if Nb == 1 else jnp.concatenate(u_parts, axis=1)
    u = u + bup_ref[...]                         # (Cup, Nb*T), bias broadcast over lanes

    # ---- shared edge masks for the k=3 "same" convolutions (per-batch boundaries) ----
    t_idx = lax.broadcasted_iota(jnp.int32, (1, Nb * T), 1) % T
    not_first = t_idx != 0                       # zero the c[t-1] tap at each batch start
    not_last = t_idx != T - 1                    # zero the c[t+1] tap at each batch end

    def shifted(c):
        # c[t-1] / c[t+1] with zero padding at per-batch edges; the lane rolls wrap
        # across batch boundaries but those columns are exactly the masked ones.
        cm = jnp.where(not_first, pltpu.roll(c, 1, axis=1), 0.0)
        cp = jnp.where(not_last, pltpu.roll(c, Nb * T - 1, axis=1), 0.0)
        return cm, cp

    def conv3_relu(parts, b):
        # parts: list of (input (Ci, Nb*T), weights (3, Co, Ci)); output (Co, Nb*T)
        y = None
        for c, w in parts:
            cm, cp = shifted(c)
            t = (jnp.dot(w[1], c, preferred_element_type=f32)
                 + jnp.dot(w[0], cm, preferred_element_type=f32)
                 + jnp.dot(w[2], cp, preferred_element_type=f32))
            y = t if y is None else y + t
        return jnp.maximum(y + b, 0.0)

    # channel concat [u | res] is folded into the weight split (w1u, w1r)
    y1 = conv3_relu([(u, w1u_ref[...]), (res, w1r_ref[...])], b1_ref[...])
    y2 = conv3_relu([(y1, w2_ref[...])], b2_ref[...])

    for n in range(Nb):
        o_ref[n] = y2[:, n * T:(n + 1) * T].astype(o_ref.dtype)   # lane-dense stores


def up_forward(x_ncl, res_ncl, params, batch_block=None):
    """x_ncl: (N, Cin, L), res_ncl: (N, Cres, 2L)  ->  (N, Cout, 2L), all NCL."""
    wup, bup, w1, b1, w2, b2 = params
    N, Cin, L = x_ncl.shape
    Cup = wup.shape[1]
    Cres = res_ncl.shape[1]
    Cout = w1.shape[0]
    T = 2 * L
    assert res_ncl.shape == (N, Cres, T)
    assert w1.shape[1] == Cup + Cres == Cin

    # Batch folding: biggest divisor of N that still leaves >= 2 grid steps (so
    # "parallel" keeps sharding across v7x's two TensorCores); override explicitly
    # on v5e/v6e (single TC) to fold as aggressively as VMEM allows.
    if batch_block is None:
        cands = [d for d in range(1, N + 1) if N % d == 0 and N // d >= 2]
        batch_block = max(cands) if cands else N
    Nb = batch_block
    assert N % Nb == 0
    grid = (N // Nb,)

    # Hoisted interleave permutation matrices (built once, resident across the grid).
    row = lax.broadcasted_iota(jnp.int32, (L, T), 0)
    col = lax.broadcasted_iota(jnp.int32, (L, T), 1)
    pe = (col == 2 * row).astype(jnp.float32)            # (L, T)
    po = (col == 2 * row + 1).astype(jnp.float32)         # (L, T)

    # Repack (tiny) weights for channels-on-sublanes matmuls; no activation transposes.
    wup_k = jnp.transpose(wup, (2, 1, 0))            # (2, Cup, Cin)
    w1_k = jnp.transpose(w1, (2, 0, 1))              # (3, Cout, Cup+Cres)
    w1u = w1_k[:, :, :Cup]                           # (3, Cout, Cup)
    w1r = w1_k[:, :, Cup:]                           # (3, Cout, Cres)
    w2_k = jnp.transpose(w2, (2, 0, 1))              # (3, Cout, Cout)

    flops = N * (
        2 * 2 * Cup * Cin * L                        # transposed-conv taps
        + 2 * 2 * Cup * L * T                        # interleave scatter matmuls
        + 2 * 3 * Cout * (Cup + Cres) * T            # conv1
        + 2 * 3 * Cout * Cout * T)                   # conv2
    bytes_accessed = 4 * (N * Cin * L + N * Cres * T + N * Cout * T
                          + 2 * L * T                # pe / po (read once)
                          + wup.size + w1.size + w2.size
                          + bup.size + b1.size + b2.size)

    out = pl.pallas_call(
        up_kernel,
        out_shape=jax.ShapeDtypeStruct((N, Cout, T), x_ncl.dtype),
        grid_spec=pltpu.PrefetchScalarGridSpec(
            num_scalar_prefetch=0,
            grid=grid,
            in_specs=[
                pl.BlockSpec((Nb, Cin, L), lambda g: (g, 0, 0)),
                pl.BlockSpec((Nb, Cres, T), lambda g: (g, 0, 0)),
                pl.BlockSpec((L, T), lambda g: (0, 0)),      # pe (resident)
                pl.BlockSpec((L, T), lambda g: (0, 0)),      # po (resident)
                pl.BlockSpec((2, Cup, Cin), lambda g: (0, 0, 0)),
                pl.BlockSpec((Cup, 1), lambda g: (0, 0)),
                pl.BlockSpec((3, Cout, Cup), lambda g: (0, 0, 0)),
                pl.BlockSpec((3, Cout, Cres), lambda g: (0, 0, 0)),
                pl.BlockSpec((Cout, 1), lambda g: (0, 0)),
                pl.BlockSpec((3, Cout, Cout), lambda g: (0, 0, 0)),
                pl.BlockSpec((Cout, 1), lambda g: (0, 0)),
            ],
            out_specs=pl.BlockSpec((Nb, Cout, T), lambda g: (g, 0, 0)),
        ),
        compiler_params=pltpu.CompilerParams(
            dimension_semantics=("parallel",),
            vmem_limit_bytes=32 * 1024 * 1024),
        cost_estimate=pl.CostEstimate(
            flops=flops, transcendentals=0, bytes_accessed=bytes_accessed),
    )(x_ncl, res_ncl, pe, po, wup_k, bup.reshape(Cup, 1),
      w1u, w1r, b1.reshape(Cout, 1), w2_k, b2.reshape(Cout, 1))
    return out                                       # already NCL


def ref_forward(x, res, wup, bup, w1, b1, w2, b2):
    """Pure-JAX reference mirroring the PyTorch module (NCL layout)."""
    N, Cin, L = x.shape
    Cup = wup.shape[1]
    # ConvTranspose1d(k=2, s=2): out[:, :, 2l+k]
    u = jnp.einsum('ncl,cok->nolk', x, wup).reshape(N, Cup, 2 * L)
    u = u + bup[None, :, None]
    c = jnp.concatenate([u, res], axis=1)
    dn = ('NCH', 'OIH', 'NCH')
    y1 = lax.conv_general_dilated(c, w1, (1,), [(1, 1)], dimension_numbers=dn)
    y1 = jnp.maximum(y1 + b1[None, :, None], 0.0)
    y2 = lax.conv_general_dilated(y1, w2, (1,), [(1, 1)], dimension_numbers=dn)
    return jnp.maximum(y2 + b2[None, :, None], 0.0)


if __name__ == "__main__":
    key = jax.random.PRNGKey(0)
    # Standard U-Net halving: Cup + Cres == in_channel.  L chosen so T = 2L = 256 lanes.
    # N=4 -> batch folding picks Nb=2 (2 grid steps: still shards v7x's 2 TCs).
    N, in_channel, out_channel, L = 4, 8, 4, 128
    ks = jax.random.split(key, 8)

    x = jax.random.normal(ks[0], (N, in_channel, L), jnp.float32)
    res = jax.random.normal(ks[1], (N, out_channel, 2 * L), jnp.float32)

    # Deterministic synthetic parameters (PyTorch layer shapes):
    wup = jax.random.normal(ks[2], (in_channel, out_channel, 2), jnp.float32) * 0.2  # ConvTranspose1d
    bup = jax.random.normal(ks[3], (out_channel,), jnp.float32) * 0.1
    w1 = jax.random.normal(ks[4], (out_channel, in_channel, 3), jnp.float32) * 0.2   # Conv1d 1
    b1 = jax.random.normal(ks[5], (out_channel,), jnp.float32) * 0.1
    w2 = jax.random.normal(ks[6], (out_channel, out_channel, 3), jnp.float32) * 0.2  # Conv1d 2
    b2 = jax.random.normal(ks[7], (out_channel,), jnp.float32) * 0.1

    out = up_forward(x, res, (wup, bup, w1, b1, w2, b2))
    out = jax.block_until_ready(out)

    ref = ref_forward(x, res, wup, bup, w1, b1, w2, b2)
    assert out.shape == (N, out_channel, 2 * L), out.shape
    assert jnp.allclose(out, ref, atol=5e-4, rtol=5e-4), float(jnp.max(jnp.abs(out - ref)))
    print("KERNEL_OK")
</pallas_src>

<mosaic_0001>
module attributes {stable_mosaic.version = 11 : i64} {
  func.func @up_kernel(%arg0: i32, %arg1: memref<2x8x128xf32, #tpu.memory_space<vmem>>, %arg2: memref<2x4x256xf32, #tpu.memory_space<vmem>>, %arg3: memref<128x256xf32, #tpu.memory_space<vmem>>, %arg4: memref<128x256xf32, #tpu.memory_space<vmem>>, %arg5: memref<2x4x8xf32, #tpu.memory_space<vmem>>, %arg6: memref<4x1xf32, #tpu.memory_space<vmem>>, %arg7: memref<3x4x4xf32, #tpu.memory_space<vmem>>, %arg8: memref<3x4x4xf32, #tpu.memory_space<vmem>>, %arg9: memref<4x1xf32, #tpu.memory_space<vmem>>, %arg10: memref<3x4x4xf32, #tpu.memory_space<vmem>>, %arg11: memref<4x1xf32, #tpu.memory_space<vmem>>, %arg12: memref<2x4x256xf32, #tpu.memory_space<vmem>>) attributes {dimension_semantics = [#tpu.dimension_semantics<parallel>], iteration_bounds = array<i64: 2>, scalar_prefetch = 0 : i64, scratch_operands = 0 : i64, tpu.core_type = #tpu.core_type<tc>, window_params = [{transform_indices = @transform_0, window_bounds = array<i64: 2, 8, 128>}, {transform_indices = @transform_1, window_bounds = array<i64: 2, 4, 256>}, {pipeline_mode = #tpu.pipeline_mode<synchronous>, transform_indices = @transform_2, window_bounds = array<i64: 128, 256>}, {pipeline_mode = #tpu.pipeline_mode<synchronous>, transform_indices = @transform_3, window_bounds = array<i64: 128, 256>}, {pipeline_mode = #tpu.pipeline_mode<synchronous>, transform_indices = @transform_4, window_bounds = array<i64: 2, 4, 8>}, {pipeline_mode = #tpu.pipeline_mode<synchronous>, transform_indices = @transform_5, window_bounds = array<i64: 4, 1>}, {pipeline_mode = #tpu.pipeline_mode<synchronous>, transform_indices = @transform_6, window_bounds = array<i64: 3, 4, 4>}, {pipeline_mode = #tpu.pipeline_mode<synchronous>, transform_indices = @transform_7, window_bounds = array<i64: 3, 4, 4>}, {pipeline_mode = #tpu.pipeline_mode<synchronous>, transform_indices = @transform_8, window_bounds = array<i64: 4, 1>}, {pipeline_mode = #tpu.pipeline_mode<synchronous>, transform_indices = @transform_9, window_bounds = array<i64: 3, 4, 4>}, {pipeline_mode = #tpu.pipeline_mode<synchronous>, transform_indices = @transform_10, window_bounds = array<i64: 4, 1>}, {transform_indices = @transform_11, window_bounds = array<i64: 2, 4, 256>}]} {
    %c0 = arith.constant 0 : index
    %c0_0 = arith.constant 0 : index
    %c0_1 = arith.constant 0 : index
    %0 = vector.load %arg1[%c0, %c0_0, %c0_1] : memref<2x8x128xf32, #tpu.memory_space<vmem>>, vector<1x8x128xf32>
    %1 = vector.shape_cast %0 : vector<1x8x128xf32> to vector<8x128xf32>
    %c1 = arith.constant 1 : index
    %c0_2 = arith.constant 0 : index
    %c0_3 = arith.constant 0 : index
    %2 = vector.load %arg1[%c1, %c0_2, %c0_3] : memref<2x8x128xf32, #tpu.memory_space<vmem>>, vector<1x8x128xf32>
    %3 = vector.shape_cast %2 : vector<1x8x128xf32> to vector<8x128xf32>
    %4 = tpu.concatenate %1, %3 in 1 : vector<8x128xf32>, vector<8x128xf32> -> vector<8x256xf32>
    %c0_4 = arith.constant 0 : index
    %c0_5 = arith.constant 0 : index
    %c0_6 = arith.constant 0 : index
    %5 = vector.load %arg2[%c0_4, %c0_5, %c0_6] : memref<2x4x256xf32, #tpu.memory_space<vmem>>, vector<1x4x256xf32>
    %6 = vector.shape_cast %5 : vector<1x4x256xf32> to vector<4x256xf32>
    %c1_7 = arith.constant 1 : index
    %c0_8 = arith.constant 0 : index
    %c0_9 = arith.constant 0 : index
    %7 = vector.load %arg2[%c1_7, %c0_8, %c0_9] : memref<2x4x256xf32, #tpu.memory_space<vmem>>, vector<1x4x256xf32>
    %8 = vector.shape_cast %7 : vector<1x4x256xf32> to vector<4x256xf32>
    %9 = tpu.concatenate %6, %8 in 1 : vector<4x256xf32>, vector<4x256xf32> -> vector<4x512xf32>
    %c0_10 = arith.constant 0 : index
    %c0_11 = arith.constant 0 : index
    %c0_12 = arith.constant 0 : index
    %10 = vector.load %arg5[%c0_10, %c0_11, %c0_12] : memref<2x4x8xf32, #tpu.memory_space<vmem>>, vector<1x4x8xf32>
    %11 = vector.shape_cast %10 : vector<1x4x8xf32> to vector<4x8xf32>
    %cst = arith.constant dense<0.000000e+00> : vector<4x256xf32>
    %12 = tpu.matmul %11, %4, %cst {dimension_numbers = #tpu.dot_dimension_numbers<[1], [0], [0], [1], [0, 0, 1, 1], [], []>} : vector<4x8xf32>, vector<8x256xf32>, vector<4x256xf32> -> vector<4x256xf32>
    %c1_13 = arith.constant 1 : index
    %c0_14 = arith.constant 0 : index
    %c0_15 = arith.constant 0 : index
    %13 = vector.load %arg5[%c1_13, %c0_14, %c0_15] : memref<2x4x8xf32, #tpu.memory_space<vmem>>, vector<1x4x8xf32>
    %14 = vector.shape_cast %13 : vector<1x4x8xf32> to vector<4x8xf32>
    %cst_16 = arith.constant dense<0.000000e+00> : vector<4x256xf32>
    %15 = tpu.matmul %14, %4, %cst_16 {dimension_numbers = #tpu.dot_dimension_numbers<[1], [0], [0], [1], [0, 0, 1, 1], [], []>} : vector<4x8xf32>, vector<8x256xf32>, vector<4x256xf32> -> vector<4x256xf32>
    %c0_17 = arith.constant 0 : index
    %c0_18 = arith.constant 0 : index
    %16 = vector.load %arg3[%c0_17, %c0_18] : memref<128x256xf32, #tpu.memory_space<vmem>>, vector<128x256xf32>
    %c0_19 = arith.constant 0 : index
    %c0_20 = arith.constant 0 : index
    %17 = vector.load %arg4[%c0_19, %c0_20] : memref<128x256xf32, #tpu.memory_space<vmem>>, vector<128x256xf32>
    %18 = vector.extract_strided_slice %12 {offsets = [0, 0], sizes = [4, 128], strides = [1, 1]} : vector<4x256xf32> to vector<4x128xf32>
    %cst_21 = arith.constant dense<0.000000e+00> : vector<4x256xf32>
    %19 = tpu.matmul %18, %16, %cst_21 {dimension_numbers = #tpu.dot_dimension_numbers<[1], [0], [0], [1], [0, 0, 1, 1], [], []>} : vector<4x128xf32>, vector<128x256xf32>, vector<4x256xf32> -> vector<4x256xf32>
    %20 = vector.extract_strided_slice %15 {offsets = [0, 0], sizes = [4, 128], strides = [1, 1]} : vector<4x256xf32> to vector<4x128xf32>
    %cst_22 = arith.constant dense<0.000000e+00> : vector<4x256xf32>
    %21 = tpu.matmul %20, %17, %cst_22 {dimension_numbers = #tpu.dot_dimension_numbers<[1], [0], [0], [1], [0, 0, 1, 1], [], []>} : vector<4x128xf32>, vector<128x256xf32>, vector<4x256xf32> -> vector<4x256xf32>
    %22 = arith.addf %19, %21 : vector<4x256xf32>
    %23 = vector.extract_strided_slice %12 {offsets = [0, 128], sizes = [4, 128], strides = [1, 1]} : vector<4x256xf32> to vector<4x128xf32>
    %cst_23 = arith.constant dense<0.000000e+00> : vector<4x256xf32>
    %24 = tpu.matmul %23, %16, %cst_23 {dimension_numbers = #tpu.dot_dimension_numbers<[1], [0], [0], [1], [0, 0, 1, 1], [], []>} : vector<4x128xf32>, vector<128x256xf32>, vector<4x256xf32> -> vector<4x256xf32>
    %25 = vector.extract_strided_slice %15 {offsets = [0, 128], sizes = [4, 128], strides = [1, 1]} : vector<4x256xf32> to vector<4x128xf32>
    %cst_24 = arith.constant dense<0.000000e+00> : vector<4x256xf32>
    %26 = tpu.matmul %25, %17, %cst_24 {dimension_numbers = #tpu.dot_dimension_numbers<[1], [0], [0], [1], [0, 0, 1, 1], [], []>} : vector<4x128xf32>, vector<128x256xf32>, vector<4x256xf32> -> vector<4x256xf32>
    %27 = arith.addf %24, %26 : vector<4x256xf32>
    %28 = tpu.concatenate %22, %27 in 1 : vector<4x256xf32>, vector<4x256xf32> -> vector<4x512xf32>
    %c0_25 = arith.constant 0 : index
    %c0_26 = arith.constant 0 : index
    %29 = vector.load %arg6[%c0_25, %c0_26] : memref<4x1xf32, #tpu.memory_space<vmem>>, vector<4x1xf32>
    %30 = vector.broadcast %29 : vector<4x1xf32> to vector<4x512xf32>
    %31 = arith.addf %28, %30 : vector<4x512xf32>
    %32 = tpu.iota {dimensions = array<i32: 1>} : vector<1x512xi32>
    %c256_i32 = arith.constant 256 : i32
    %c0_i32 = arith.constant 0 : i32
    %33 = arith.cmpi eq, %c256_i32, %c0_i32 : i32
    %c1_i32 = arith.constant 1 : i32
    %34 = arith.select %33, %c1_i32, %c256_i32 : i32
    %35 = vector.broadcast %34 : i32 to vector<1x512xi32>
    %36 = arith.remsi %32, %35 : vector<1x512xi32>
    %c0_i32_27 = arith.constant 0 : i32
    %37 = vector.broadcast %c0_i32_27 : i32 to vector<1x512xi32>
    %38 = arith.cmpi ne, %36, %37 : vector<1x512xi32>
    %c0_i32_28 = arith.constant 0 : i32
    %39 = vector.broadcast %c0_i32_28 : i32 to vector<1x512xi32>
    %40 = arith.cmpi slt, %36, %39 : vector<1x512xi32>
    %c0_i32_29 = arith.constant 0 : i32
    %41 = arith.cmpi slt, %34, %c0_i32_29 : i32
    %42 = vector.broadcast %41 : i1 to vector<1x512xi1>
    %43 = vector.broadcast %42 : vector<1x512xi1> to vector<1x512xi1>
    %44 = arith.xori %40, %43 : vector<1x512xi1>
    %45 = arith.andi %44, %38 : vector<1x512xi1>
    %46 = vector.broadcast %34 : i32 to vector<1x512xi32>
    %47 = arith.addi %36, %46 : vector<1x512xi32>
    %48 = arith.select %45, %47, %36 : vector<1x512xi1>, vector<1x512xi32>
    %c0_i32_30 = arith.constant 0 : i32
    %49 = vector.broadcast %c0_i32_30 : i32 to vector<1x512xi32>
    %50 = arith.cmpi ne, %48, %49 : vector<1x512xi32>
    %c255_i32 = arith.constant 255 : i32
    %51 = vector.broadcast %c255_i32 : i32 to vector<1x512xi32>
    %52 = arith.cmpi ne, %48, %51 : vector<1x512xi32>
    %c0_31 = arith.constant 0 : index
    %c0_32 = arith.constant 0 : index
    %c0_33 = arith.constant 0 : index
    %53 = vector.load %arg7[%c0_31, %c0_32, %c0_33] : memref<3x4x4xf32, #tpu.memory_space<vmem>>, vector<3x4x4xf32>
    %c0_34 = arith.constant 0 : index
    %c0_35 = arith.constant 0 : index
    %c0_36 = arith.constant 0 : index
    %54 = vector.load %arg8[%c0_34, %c0_35, %c0_36] : memref<3x4x4xf32, #tpu.memory_space<vmem>>, vector<3x4x4xf32>
    %c0_37 = arith.constant 0 : index
    %c0_38 = arith.constant 0 : index
    %55 = vector.load %arg9[%c0_37, %c0_38] : memref<4x1xf32, #tpu.memory_space<vmem>>, vector<4x1xf32>
    %c1_i32_39 = arith.constant 1 : i32
    %56 = tpu.dynamic_rotate %31 by %c1_i32_39 dim 1 : vector<4x512xf32>, i32 -> vector<4x512xf32>
    %cst_40 = arith.constant 0.000000e+00 : f32
    %57 = vector.shape_cast %50 : vector<1x512xi1> to vector<1x512xi1>
    %58 = vector.broadcast %57 : vector<1x512xi1> to vector<4x512xi1>
    %59 = vector.broadcast %cst_40 : f32 to vector<4x512xf32>
    %60 = arith.select %58, %56, %59 : vector<4x512xi1>, vector<4x512xf32>
    %c511_i32 = arith.constant 511 : i32
    %61 = tpu.dynamic_rotate %31 by %c511_i32 dim 1 : vector<4x512xf32>, i32 -> vector<4x512xf32>
    %cst_41 = arith.constant 0.000000e+00 : f32
    %62 = vector.shape_cast %52 : vector<1x512xi1> to vector<1x512xi1>
    %63 = vector.broadcast %62 : vector<1x512xi1> to vector<4x512xi1>
    %64 = vector.broadcast %cst_41 : f32 to vector<4x512xf32>
    %65 = arith.select %63, %61, %64 : vector<4x512xi1>, vector<4x512xf32>
    %66 = vector.extract_strided_slice %53 {offsets = [1, 0, 0], sizes = [1, 4, 4], strides = [1, 1, 1]} : vector<3x4x4xf32> to vector<1x4x4xf32>
    %67 = vector.shape_cast %66 : vector<1x4x4xf32> to vector<4x4xf32>
    %cst_42 = arith.constant dense<0.000000e+00> : vector<4x512xf32>
    %68 = tpu.matmul %67, %31, %cst_42 {dimension_numbers = #tpu.dot_dimension_numbers<[1], [0], [0], [1], [0, 0, 1, 1], [], []>} : vector<4x4xf32>, vector<4x512xf32>, vector<4x512xf32> -> vector<4x512xf32>
    %69 = vector.extract_strided_slice %53 {offsets = [0, 0, 0], sizes = [1, 4, 4], strides = [1, 1, 1]} : vector<3x4x4xf32> to vector<1x4x4xf32>
    %70 = vector.shape_cast %69 : vector<1x4x4xf32> to vector<4x4xf32>
    %cst_43 = arith.constant dense<0.000000e+00> : vector<4x512xf32>
    %71 = tpu.matmul %70, %60, %cst_43 {dimension_numbers = #tpu.dot_dimension_numbers<[1], [0], [0], [1], [0, 0, 1, 1], [], []>} : vector<4x4xf32>, vector<4x512xf32>, vector<4x512xf32> -> vector<4x512xf32>
    %72 = arith.addf %68, %71 : vector<4x512xf32>
    %73 = vector.extract_strided_slice %53 {offsets = [2, 0, 0], sizes = [1, 4, 4], strides = [1, 1, 1]} : vector<3x4x4xf32> to vector<1x4x4xf32>
    %74 = vector.shape_cast %73 : vector<1x4x4xf32> to vector<4x4xf32>
    %cst_44 = arith.constant dense<0.000000e+00> : vector<4x512xf32>
    %75 = tpu.matmul %74, %65, %cst_44 {dimension_numbers = #tpu.dot_dimension_numbers<[1], [0], [0], [1], [0, 0, 1, 1], [], []>} : vector<4x4xf32>, vector<4x512xf32>, vector<4x512xf32> -> vector<4x512xf32>
    %76 = arith.addf %72, %75 : vector<4x512xf32>
    %c1_i32_45 = arith.constant 1 : i32
    %77 = tpu.dynamic_rotate %9 by %c1_i32_45 dim 1 : vector<4x512xf32>, i32 -> vector<4x512xf32>
    %cst_46 = arith.constant 0.000000e+00 : f32
    %78 = vector.shape_cast %50 : vector<1x512xi1> to vector<1x512xi1>
    %79 = vector.broadcast %78 : vector<1x512xi1> to vector<4x512xi1>
    %80 = vector.broadcast %cst_46 : f32 to vector<4x512xf32>
    %81 = arith.select %79, %77, %80 : vector<4x512xi1>, vector<4x512xf32>
    %c511_i32_47 = arith.constant 511 : i32
    %82 = tpu.dynamic_rotate %9 by %c511_i32_47 dim 1 : vector<4x512xf32>, i32 -> vector<4x512xf32>
    %cst_48 = arith.constant 0.000000e+00 : f32
    %83 = vector.shape_cast %52 : vector<1x512xi1> to vector<1x512xi1>
    %84 = vector.broadcast %83 : vector<1x512xi1> to vector<4x512xi1>
    %85 = vector.broadcast %cst_48 : f32 to vector<4x512xf32>
    %86 = arith.select %84, %82, %85 : vector<4x512xi1>, vector<4x512xf32>
    %87 = vector.extract_strided_slice %54 {offsets = [1, 0, 0], sizes = [1, 4, 4], strides = [1, 1, 1]} : vector<3x4x4xf32> to vector<1x4x4xf32>
    %88 = vector.shape_cast %87 : vector<1x4x4xf32> to vector<4x4xf32>
    %cst_49 = arith.constant dense<0.000000e+00> : vector<4x512xf32>
    %89 = tpu.matmul %88, %9, %cst_49 {dimension_numbers = #tpu.dot_dimension_numbers<[1], [0], [0], [1], [0, 0, 1, 1], [], []>} : vector<4x4xf32>, vector<4x512xf32>, vector<4x512xf32> -> vector<4x512xf32>
    %90 = vector.extract_strided_slice %54 {offsets = [0, 0, 0], sizes = [1, 4, 4], strides = [1, 1, 1]} : vector<3x4x4xf32> to vector<1x4x4xf32>
    %91 = vector.shape_cast %90 : vector<1x4x4xf32> to vector<4x4xf32>
    %cst_50 = arith.constant dense<0.000000e+00> : vector<4x512xf32>
    %92 = tpu.matmul %91, %81, %cst_50 {dimension_numbers = #tpu.dot_dimension_numbers<[1], [0], [0], [1], [0, 0, 1, 1], [], []>} : vector<4x4xf32>, vector<4x512xf32>, vector<4x512xf32> -> vector<4x512xf32>
    %93 = arith.addf %89, %92 : vector<4x512xf32>
    %94 = vector.extract_strided_slice %54 {offsets = [2, 0, 0], sizes = [1, 4, 4], strides = [1, 1, 1]} : vector<3x4x4xf32> to vector<1x4x4xf32>
    %95 = vector.shape_cast %94 : vector<1x4x4xf32> to vector<4x4xf32>
    %cst_51 = arith.constant dense<0.000000e+00> : vector<4x512xf32>
    %96 = tpu.matmul %95, %86, %cst_51 {dimension_numbers = #tpu.dot_dimension_numbers<[1], [0], [0], [1], [0, 0, 1, 1], [], []>} : vector<4x4xf32>, vector<4x512xf32>, vector<4x512xf32> -> vector<4x512xf32>
    %97 = arith.addf %93, %96 : vector<4x512xf32>
    %98 = arith.addf %76, %97 : vector<4x512xf32>
    %99 = vector.broadcast %55 : vector<4x1xf32> to vector<4x512xf32>
    %100 = arith.addf %98, %99 : vector<4x512xf32>
    %cst_52 = arith.constant 0.000000e+00 : f32
    %101 = vector.broadcast %cst_52 : f32 to vector<4x512xf32>
    %102 = arith.maximumf %100, %101 : vector<4x512xf32>
    %c0_53 = arith.constant 0 : index
    %c0_54 = arith.constant 0 : index
    %c0_55 = arith.constant 0 : index
    %103 = vector.load %arg10[%c0_53, %c0_54, %c0_55] : memref<3x4x4xf32, #tpu.memory_space<vmem>>, vector<3x4x4xf32>
    %c0_56 = arith.constant 0 : index
    %c0_57 = arith.constant 0 : index
    %104 = vector.load %arg11[%c0_56, %c0_57] : memref<4x1xf32, #tpu.memory_space<vmem>>, vector<4x1xf32>
    %c1_i32_58 = arith.constant 1 : i32
    %105 = tpu.dynamic_rotate %102 by %c1_i32_58 dim 1 : vector<4x512xf32>, i32 -> vector<4x512xf32>
    %cst_59 = arith.constant 0.000000e+00 : f32
    %106 = vector.shape_cast %50 : vector<1x512xi1> to vector<1x512xi1>
    %107 = vector.broadcast %106 : vector<1x512xi1> to vector<4x512xi1>
    %108 = vector.broadcast %cst_59 : f32 to vector<4x512xf32>
    %109 = arith.select %107, %105, %108 : vector<4x512xi1>, vector<4x512xf32>
    %c511_i32_60 = arith.constant 511 : i32
    %110 = tpu.dynamic_rotate %102 by %c511_i32_60 dim 1 : vector<4x512xf32>, i32 -> vector<4x512xf32>
    %cst_61 = arith.constant 0.000000e+00 : f32
    %111 = vector.shape_cast %52 : vector<1x512xi1> to vector<1x512xi1>
    %112 = vector.broadcast %111 : vector<1x512xi1> to vector<4x512xi1>
    %113 = vector.broadcast %cst_61 : f32 to vector<4x512xf32>
    %114 = arith.select %112, %110, %113 : vector<4x512xi1>, vector<4x512xf32>
    %115 = vector.extract_strided_slice %103 {offsets = [1, 0, 0], sizes = [1, 4, 4], strides = [1, 1, 1]} : vector<3x4x4xf32> to vector<1x4x4xf32>
    %116 = vector.shape_cast %115 : vector<1x4x4xf32> to vector<4x4xf32>
    %cst_62 = arith.constant dense<0.000000e+00> : vector<4x512xf32>
    %117 = tpu.matmul %116, %102, %cst_62 {dimension_numbers = #tpu.dot_dimension_numbers<[1], [0], [0], [1], [0, 0, 1, 1], [], []>} : vector<4x4xf32>, vector<4x512xf32>, vector<4x512xf32> -> vector<4x512xf32>
    %118 = vector.extract_strided_slice %103 {offsets = [0, 0, 0], sizes = [1, 4, 4], strides = [1, 1, 1]} : vector<3x4x4xf32> to vector<1x4x4xf32>
    %119 = vector.shape_cast %118 : vector<1x4x4xf32> to vector<4x4xf32>
    %cst_63 = arith.constant dense<0.000000e+00> : vector<4x512xf32>
    %120 = tpu.matmul %119, %109, %cst_63 {dimension_numbers = #tpu.dot_dimension_numbers<[1], [0], [0], [1], [0, 0, 1, 1], [], []>} : vector<4x4xf32>, vector<4x512xf32>, vector<4x512xf32> -> vector<4x512xf32>
    %121 = arith.addf %117, %120 : vector<4x512xf32>
    %122 = vector.extract_strided_slice %103 {offsets = [2, 0, 0], sizes = [1, 4, 4], strides = [1, 1, 1]} : vector<3x4x4xf32> to vector<1x4x4xf32>
    %123 = vector.shape_cast %122 : vector<1x4x4xf32> to vector<4x4xf32>
    %cst_64 = arith.constant dense<0.000000e+00> : vector<4x512xf32>
    %124 = tpu.matmul %123, %114, %cst_64 {dimension_numbers = #tpu.dot_dimension_numbers<[1], [0], [0], [1], [0, 0, 1, 1], [], []>} : vector<4x4xf32>, vector<4x512xf32>, vector<4x512xf32> -> vector<4x512xf32>
    %125 = arith.addf %121, %124 : vector<4x512xf32>
    %126 = vector.broadcast %104 : vector<4x1xf32> to vector<4x512xf32>
    %127 = arith.addf %125, %126 : vector<4x512xf32>
    %cst_65 = arith.constant 0.000000e+00 : f32
    %128 = vector.broadcast %cst_65 : f32 to vector<4x512xf32>
    %129 = arith.maximumf %127, %128 : vector<4x512xf32>
    %130 = vector.extract_strided_slice %129 {offsets = [0, 0], sizes = [4, 256], strides = [1, 1]} : vector<4x512xf32> to vector<4x256xf32>
    %c0_66 = arith.constant 0 : index
    %c0_67 = arith.constant 0 : index
    %c0_68 = arith.constant 0 : index
    %131 = vector.load %arg12[%c0_66, %c0_67, %c0_68] : memref<2x4x256xf32, #tpu.memory_space<vmem>>, vector<1x4x256xf32>
    %132 = vector.shape_cast %131 : vector<1x4x256xf32> to vector<4x256xf32>
    %133 = vector.shape_cast %130 : vector<4x256xf32> to vector<1x4x256xf32>
    tpu.vector_store %arg12[%c0_66, %c0_67, %c0_68], %133 {strides = array<i32>} : memref<2x4x256xf32, #tpu.memory_space<vmem>>, vector<1x4x256xf32>,
    %134 = vector.extract_strided_slice %129 {offsets = [0, 256], sizes = [4, 256], strides = [1, 1]} : vector<4x512xf32> to vector<4x256xf32>
    %c1_69 = arith.constant 1 : index
    %c0_70 = arith.constant 0 : index
    %c0_71 = arith.constant 0 : index
    %135 = vector.load %arg12[%c1_69, %c0_70, %c0_71] : memref<2x4x256xf32, #tpu.memory_space<vmem>>, vector<1x4x256xf32>
    %136 = vector.shape_cast %135 : vector<1x4x256xf32> to vector<4x256xf32>
    %137 = vector.shape_cast %134 : vector<4x256xf32> to vector<1x4x256xf32>
    tpu.vector_store %arg12[%c1_69, %c0_70, %c0_71], %137 {strides = array<i32>} : memref<2x4x256xf32, #tpu.memory_space<vmem>>, vector<1x4x256xf32>,
    return
  }
  func.func @transform_0(%arg0: i32) -> (i32, i32, i32) {
    %c0_i32 = arith.constant 0 : i32
    %c0_i32_0 = arith.constant 0 : i32
    %c0_i32_1 = arith.constant 0 : i32
    return %arg0, %c0_i32, %c0_i32_0 : i32, i32, i32
  }
  func.func @transform_1(%arg0: i32) -> (i32, i32, i32) {
    %c0_i32 = arith.constant 0 : i32
    %c0_i32_0 = arith.constant 0 : i32
    %c0_i32_1 = arith.constant 0 : i32
    return %arg0, %c0_i32, %c0_i32_0 : i32, i32, i32
  }
  func.func @transform_2(%arg0: i32) -> (i32, i32) {
    %c0_i32 = arith.constant 0 : i32
    %c0_i32_0 = arith.constant 0 : i32
    %c0_i32_1 = arith.constant 0 : i32
    return %c0_i32, %c0_i32_0 : i32, i32
  }
  func.func @transform_3(%arg0: i32) -> (i32, i32) {
    %c0_i32 = arith.constant 0 : i32
    %c0_i32_0 = arith.constant 0 : i32
    %c0_i32_1 = arith.constant 0 : i32
    return %c0_i32, %c0_i32_0 : i32, i32
  }
  func.func @transform_4(%arg0: i32) -> (i32, i32, i32) {
    %c0_i32 = arith.constant 0 : i32
    %c0_i32_0 = arith.constant 0 : i32
    %c0_i32_1 = arith.constant 0 : i32
    %c0_i32_2 = arith.constant 0 : i32
    return %c0_i32, %c0_i32_0, %c0_i32_1 : i32, i32, i32
  }
  func.func @transform_5(%arg0: i32) -> (i32, i32) {
    %c0_i32 = arith.constant 0 : i32
    %c0_i32_0 = arith.constant 0 : i32
    %c0_i32_1 = arith.constant 0 : i32
    return %c0_i32, %c0_i32_0 : i32, i32
  }
  func.func @transform_6(%arg0: i32) -> (i32, i32, i32) {
    %c0_i32 = arith.constant 0 : i32
    %c0_i32_0 = arith.constant 0 : i32
    %c0_i32_1 = arith.constant 0 : i32
    %c0_i32_2 = arith.constant 0 : i32
    return %c0_i32, %c0_i32_0, %c0_i32_1 : i32, i32, i32
  }
  func.func @transform_7(%arg0: i32) -> (i32, i32, i32) {
    %c0_i32 = arith.constant 0 : i32
    %c0_i32_0 = arith.constant 0 : i32
    %c0_i32_1 = arith.constant 0 : i32
    %c0_i32_2 = arith.constant 0 : i32
    return %c0_i32, %c0_i32_0, %c0_i32_1 : i32, i32, i32
  }
  func.func @transform_8(%arg0: i32) -> (i32, i32) {
    %c0_i32 = arith.constant 0 : i32
    %c0_i32_0 = arith.constant 0 : i32
    %c0_i32_1 = arith.constant 0 : i32
    return %c0_i32, %c0_i32_0 : i32, i32
  }
  func.func @transform_9(%arg0: i32) -> (i32, i32, i32) {
    %c0_i32 = arith.constant 0 : i32
    %c0_i32_0 = arith.constant 0 : i32
    %c0_i32_1 = arith.constant 0 : i32
    %c0_i32_2 = arith.constant 0 : i32
    return %c0_i32, %c0_i32_0, %c0_i32_1 : i32, i32, i32
  }
  func.func @transform_10(%arg0: i32) -> (i32, i32) {
    %c0_i32 = arith.constant 0 : i32
    %c0_i32_0 = arith.constant 0 : i32
    %c0_i32_1 = arith.constant 0 : i32
    return %c0_i32, %c0_i32_0 : i32, i32
  }
  func.func @transform_11(%arg0: i32) -> (i32, i32, i32) {
    %c0_i32 = arith.constant 0 : i32
    %c0_i32_0 = arith.constant 0 : i32
    %c0_i32_1 = arith.constant 0 : i32
    return %arg0, %c0_i32, %c0_i32_0 : i32, i32, i32
  }
}

</mosaic_0001>

<llo_original>
// kernel: tpu_custom_call.1
$region0: #{tpu_custom_call.1}
  #allocation0 [shape = 'u32[]', space=smem, size = 0x4, offset = 0x4, fixed_abs, tag = 'smem constant byte address 0x4 - core index']
  #allocation1 [shape = 'u32[144,128]{1,0:T(1,128)}', space=vmem, size = 0x12000, scoped, tag = 'internal scratch']
  %s0 = inlined_call_operand.hbm [shape: f32[4,8,128], index: 0, kind: input, shape index: {}]
  %s1 = inlined_call_operand.hbm [shape: f32[4,4,256], index: 1, kind: input, shape index: {}]
  %s2 = inlined_call_operand.hbm [shape: f32[128,256], index: 2, kind: input, shape index: {}]
  %s3 = inlined_call_operand.hbm [shape: f32[128,256], index: 3, kind: input, shape index: {}]
  %s4 = inlined_call_operand.hbm [shape: f32[2,4,8], index: 4, kind: input, shape index: {}]
  %s5 = inlined_call_operand.vmem [shape: f32[4,1], index: 5, kind: input, shape index: {}]
  %s6 = inlined_call_operand.vmem [shape: f32[3,4,4], index: 6, kind: input, shape index: {}]
  %s7 = inlined_call_operand.vmem [shape: f32[3,4,4], index: 7, kind: input, shape index: {}]
  %s8 = inlined_call_operand.vmem [shape: f32[4,1], index: 8, kind: input, shape index: {}]
  %s9 = inlined_call_operand.vmem [shape: f32[3,4,4], index: 9, kind: input, shape index: {}]
  %s10 = inlined_call_operand.vmem [shape: f32[4,1], index: 10, kind: input, shape index: {}]
  %s11 = inlined_call_operand.hbm [shape: f32[4,4,256], index: 11, kind: output, shape index: {}]
  %s12 = sld [smem:[#allocation0]]
  $region97: #{tpu_custom_call.1} parent=0
    _
  %s14 = ssub.s32 1, %s12
  %s15 = scalar_select 0, %s14, %s12
  $region1: #{tpu_custom_call.1} parent=0
    #allocation2 [shape = 'u8[16384]{0}', space=vmem, size = 0x4000, scoped, tag = 'input window, operand 0']
    #allocation3 [shape = 's32[2]{0}', space=sflag, size = 0x8, scoped, tag = 'scoped memory for tpu_custom_call.1']
    #allocation4 [shape = 's32[2]{0}', space=sflag, size = 0x8, scoped, tag = 'scoped memory for tpu_custom_call.1']
    #allocation5 [shape = 'u8[16384]{0}', space=vmem, size = 0x4000, scoped, tag = 'input window, operand 1']
    #allocation6 [shape = 's32[2]{0}', space=sflag, size = 0x8, scoped, tag = 'scoped memory for tpu_custom_call.1']
    #allocation7 [shape = 'u8[131072]{0}', space=vmem, size = 0x20000, scoped, tag = 'input window, operand 2, single buffered']
    #allocation8 [shape = 'u8[131072]{0}', space=vmem, size = 0x20000, scoped, tag = 'input window, operand 3, single buffered']
    #allocation9 [shape = 's32[1]{0}', space=sflag, size = 0x4, scoped, tag = 'scoped memory for tpu_custom_call.1']
    #allocation10 [shape = 'u8[4096]{0}', space=vmem, size = 0x1000, scoped, tag = 'input window, operand 4, single buffered']
    #allocation11 [shape = 'u8[16384]{0}', space=vmem, size = 0x4000, scoped, tag = 'output window, operand 0']
    %16 = vsyncpa [#allocation3], 0
    %s17 = scalar_lea.sflag [#allocation3], 1
    %18 = vsyncpa %s17, 0
    %19 = vsyncpa [#allocation6], 0
    %s20 = scalar_lea.sflag [#allocation6], 1
    %21 = vsyncpa %s20, 0
    %22 = vsyncpa [#allocation9], 0
    %23 = vsyncpa [#allocation4], 0
    %s24 = scalar_lea.sflag [#allocation4], 1
    %25 = vsyncpa %s24, 0
    loop: start=0, step=1, limit=4
    $region2: #{tpu_custom_call.1} parent=1 // loop_pre_header
      _
    $region3: #{tpu_custom_call.1} parent=1 // loop_header
      %s27 = sphi 0, %s31
      %p28 = scmp.ge.s32.totalorder %s27, 4
      %s37 = sphi 0, %s39
      %s40 = sphi 0, %s37
      %s41 = sphi 0, %s40
      %s57 = sphi 0, %s41
      %s63 = sphi 0, %s65
      %s66 = sphi 0, %s63
      %s67 = sphi 0, %s66
      %s83 = sphi 0, %s67
      %s87 = sphi 0, %s87
      %s89 = sphi 0, %s87
      %s90 = sphi 0, %s89
      %s104 = sphi 0, %s90
      %s108 = sphi 0, %s108
      %s110 = sphi 0, %s108
      %s111 = sphi 0, %s110
      %s125 = sphi 0, %s111
      %s129 = sphi 0, %s129
      %s131 = sphi 0, %s129
      %s132 = sphi 0, %s131
      %s146 = sphi 0, %s132
      %s150 = sphi 0, %s150
      %s152 = sphi 0, %s150
      %s153 = sphi 0, %s152
      %s167 = sphi 0, %s153
      %s171 = sphi 0, %s171
      %s173 = sphi 0, %s171
      %s174 = sphi 0, %s173
      %s188 = sphi 0, %s174
      %s192 = sphi 0, %s192
      %s194 = sphi 0, %s192
      %s195 = sphi 0, %s194
      %s209 = sphi 0, %s195
      %s213 = sphi 0, %s213
      %s215 = sphi 0, %s213
      %s216 = sphi 0, %s215
      %s230 = sphi 0, %s216
      %s234 = sphi 0, %s234
      %s236 = sphi 0, %s234
      %s237 = sphi 0, %s236
      %s251 = sphi 0, %s237
      %s255 = sphi 0, %s255
      %s257 = sphi 0, %s255
      %s258 = sphi 0, %s257
      %s272 = sphi 0, %s258
      %s278 = sphi 0, %s280
      %s281 = sphi 0, %s278
      %s282 = sphi 0, %s281
      %s298 = sphi 0, %s282
    $region4: #{tpu_custom_call.1} parent=1 // loop_header_branch
      %30 = sbr.rel (%p28) target = $region8
    $region5: #{tpu_custom_call.1} parent=1 // loop_body
      %s32 = ssub.s32 %s27, 1
      %s33 = ssub.s32 %s27, 2
      %s34 = sadd.s32 %s27, 1
      %s35 = ssub.s32 %s27, %s34
      %p36 = scmp.eq.s32.totalorder %s35, 0
      %s38 = sadd.s32 %s37, 1
      %s39 = scalar_select %p36, %s37, %s38
      %p42 = pneg %p36
      %p43 = scmp.eq.s32.totalorder %s27, 1
      %p44 = por %p42, %p43
      %p45 = scmp.ne.s32.totalorder %s37, %s40
      %p46 = scmp.eq.s32.totalorder %s27, 0
      %p47 = por %p45, %p46
      %p48 = scmp.ne.s32.totalorder %s37, %s40
      %p49 = scmp.eq.s32.totalorder %s32, 1
      %p50 = por %p48, %p49
      %p51 = scmp.ne.s32.totalorder %s40, %s41
      %p52 = scmp.eq.s32.totalorder %s32, 0
      %p53 = por %p51, %p52
      %p54 = scmp.ne.s32.totalorder %s40, %s41
      %p55 = scmp.eq.s32.totalorder %s33, 1
      %p56 = por %p54, %p55
      %p58 = scmp.ne.s32.totalorder %s41, %s57
      %p59 = scmp.eq.s32.totalorder %s33, 0
      %p60 = por %p58, %p59
      %s61 = ssub.s32 %s27, %s34
      %p62 = scmp.eq.s32.totalorder %s61, 0
      %s64 = sadd.s32 %s63, 1
      %s65 = scalar_select %p62, %s63, %s64
      %p68 = pneg %p62
      %p69 = scmp.eq.s32.totalorder %s27, 1
      %p70 = por %p68, %p69
      %p71 = scmp.ne.s32.totalorder %s63, %s66
      %p72 = scmp.eq.s32.totalorder %s27, 0
      %p73 = por %p71, %p72
      %p74 = scmp.ne.s32.totalorder %s63, %s66
      %p75 = scmp.eq.s32.totalorder %s32, 1
      %p76 = por %p74, %p75
      %p77 = scmp.ne.s32.totalorder %s66, %s67
      %p78 = scmp.eq.s32.totalorder %s32, 0
      %p79 = por %p77, %p78
      %p80 = scmp.ne.s32.totalorder %s66, %s67
      %p81 = scmp.eq.s32.totalorder %s33, 1
      %p82 = por %p80, %p81
      %p84 = scmp.ne.s32.totalorder %s67, %s83
      %p85 = scmp.eq.s32.totalorder %s33, 0
      %p86 = por %p84, %p85
      %s88 = sadd.s32 %s87, 1
      %p91 = scmp.eq.s32.totalorder %s27, 1
      %p92 = scmp.ne.s32.totalorder %s87, %s89
      %p93 = scmp.eq.s32.totalorder %s27, 0
      %p94 = por %p92, %p93
      %p95 = scmp.ne.s32.totalorder %s87, %s89
      %p96 = scmp.eq.s32.totalorder %s32, 1
      %p97 = por %p95, %p96
      %p98 = scmp.ne.s32.totalorder %s89, %s90
      %p99 = scmp.eq.s32.totalorder %s32, 0
      %p100 = por %p98, %p99
      %p101 = scmp.ne.s32.totalorder %s89, %s90
      %p102 = scmp.eq.s32.totalorder %s33, 1
      %p103 = por %p101, %p102
      %p105 = scmp.ne.s32.totalorder %s90, %s104
      %p106 = scmp.eq.s32.totalorder %s33, 0
      %p107 = por %p105, %p106
      %s109 = sadd.s32 %s108, 1
      %p112 = scmp.eq.s32.totalorder %s27, 1
      %p113 = scmp.ne.s32.totalorder %s108, %s110
      %p114 = scmp.eq.s32.totalorder %s27, 0
      %p115 = por %p113, %p114
      %p116 = scmp.ne.s32.totalorder %s108, %s110
      %p117 = scmp.eq.s32.totalorder %s32, 1
      %p118 = por %p116, %p117
      %p119 = scmp.ne.s32.totalorder %s110, %s111
      %p120 = scmp.eq.s32.totalorder %s32, 0
      %p121 = por %p119, %p120
      %p122 = scmp.ne.s32.totalorder %s110, %s111
      %p123 = scmp.eq.s32.totalorder %s33, 1
      %p124 = por %p122, %p123
      %p126 = scmp.ne.s32.totalorder %s111, %s125
      %p127 = scmp.eq.s32.totalorder %s33, 0
      %p128 = por %p126, %p127
      %s130 = sadd.s32 %s129, 1
      %p133 = scmp.eq.s32.totalorder %s27, 1
      %p134 = scmp.ne.s32.totalorder %s129, %s131
      %p135 = scmp.eq.s32.totalorder %s27, 0
      %p136 = por %p134, %p135
      %p137 = scmp.ne.s32.totalorder %s129, %s131
      %p138 = scmp.eq.s32.totalorder %s32, 1
      %p139 = por %p137, %p138
      %p140 = scmp.ne.s32.totalorder %s131, %s132
      %p141 = scmp.eq.s32.totalorder %s32, 0
      %p142 = por %p140, %p141
      %p143 = scmp.ne.s32.totalorder %s131, %s132
      %p144 = scmp.eq.s32.totalorder %s33, 1
      %p145 = por %p143, %p144
      %p147 = scmp.ne.s32.totalorder %s132, %s146
      %p148 = scmp.eq.s32.totalorder %s33, 0
      %p149 = por %p147, %p148
      %s151 = sadd.s32 %s150, 1
      %p154 = scmp.eq.s32.totalorder %s27, 1
      %p155 = scmp.ne.s32.totalorder %s150, %s152
      %p156 = scmp.eq.s32.totalorder %s27, 0
      %p157 = por %p155, %p156
      %p158 = scmp.ne.s32.totalorder %s150, %s152
      %p159 = scmp.eq.s32.totalorder %s32, 1
      %p160 = por %p158, %p159
      %p161 = scmp.ne.s32.totalorder %s152, %s153
      %p162 = scmp.eq.s32.totalorder %s32, 0
      %p163 = por %p161, %p162
      %p164 = scmp.ne.s32.totalorder %s152, %s153
      %p165 = scmp.eq.s32.totalorder %s33, 1
      %p166 = por %p164, %p165
      %p168 = scmp.ne.s32.totalorder %s153, %s167
      %p169 = scmp.eq.s32.totalorder %s33, 0
      %p170 = por %p168, %p169
      %s172 = sadd.s32 %s171, 1
      %p175 = scmp.eq.s32.totalorder %s27, 1
      %p176 = scmp.ne.s32.totalorder %s171, %s173
      %p177 = scmp.eq.s32.totalorder %s27, 0
      %p178 = por %p176, %p177
      %p179 = scmp.ne.s32.totalorder %s171, %s173
      %p180 = scmp.eq.s32.totalorder %s32, 1
      %p181 = por %p179, %p180
      %p182 = scmp.ne.s32.totalorder %s173, %s174
      %p183 = scmp.eq.s32.totalorder %s32, 0
      %p184 = por %p182, %p183
      %p185 = scmp.ne.s32.totalorder %s173, %s174
      %p186 = scmp.eq.s32.totalorder %s33, 1
      %p187 = por %p185, %p186
      %p189 = scmp.ne.s32.totalorder %s174, %s188
      %p190 = scmp.eq.s32.totalorder %s33, 0
      %p191 = por %p189, %p190
      %s193 = sadd.s32 %s192, 1
      %p196 = scmp.eq.s32.totalorder %s27, 1
      %p197 = scmp.ne.s32.totalorder %s192, %s194
      %p198 = scmp.eq.s32.totalorder %s27, 0
      %p199 = por %p197, %p198
      %p200 = scmp.ne.s32.totalorder %s192, %s194
      %p201 = scmp.eq.s32.totalorder %s32, 1
      %p202 = por %p200, %p201
      %p203 = scmp.ne.s32.totalorder %s194, %s195
      %p204 = scmp.eq.s32.totalorder %s32, 0
      %p205 = por %p203, %p204
      %p206 = scmp.ne.s32.totalorder %s194, %s195
      %p207 = scmp.eq.s32.totalorder %s33, 1
      %p208 = por %p206, %p207
      %p210 = scmp.ne.s32.totalorder %s195, %s209
      %p211 = scmp.eq.s32.totalorder %s33, 0
      %p212 = por %p210, %p211
      %s214 = sadd.s32 %s213, 1
      %p217 = scmp.eq.s32.totalorder %s27, 1
      %p218 = scmp.ne.s32.totalorder %s213, %s215
      %p219 = scmp.eq.s32.totalorder %s27, 0
      %p220 = por %p218, %p219
      %p221 = scmp.ne.s32.totalorder %s213, %s215
      %p222 = scmp.eq.s32.totalorder %s32, 1
      %p223 = por %p221, %p222
      %p224 = scmp.ne.s32.totalorder %s215, %s216
      %p225 = scmp.eq.s32.totalorder %s32, 0
      %p226 = por %p224, %p225
      %p227 = scmp.ne.s32.totalorder %s215, %s216
      %p228 = scmp.eq.s32.totalorder %s33, 1
      %p229 = por %p227, %p228
      %p231 = scmp.ne.s32.totalorder %s216, %s230
      %p232 = scmp.eq.s32.totalorder %s33, 0
      %p233 = por %p231, %p232
      %s235 = sadd.s32 %s234, 1
      %p238 = scmp.eq.s32.totalorder %s27, 1
      %p239 = scmp.ne.s32.totalorder %s234, %s236
      %p240 = scmp.eq.s32.totalorder %s27, 0
      %p241 = por %p239, %p240
      %p242 = scmp.ne.s32.totalorder %s234, %s236
      %p243 = scmp.eq.s32.totalorder %s32, 1
      %p244 = por %p242, %p243
      %p245 = scmp.ne.s32.totalorder %s236, %s237
      %p246 = scmp.eq.s32.totalorder %s32, 0
      %p247 = por %p245, %p246
      %p248 = scmp.ne.s32.totalorder %s236, %s237
      %p249 = scmp.eq.s32.totalorder %s33, 1
      %p250 = por %p248, %p249
      %p252 = scmp.ne.s32.totalorder %s237, %s251
      %p253 = scmp.eq.s32.totalorder %s33, 0
      %p254 = por %p252, %p253
      %s256 = sadd.s32 %s255, 1
      %p259 = scmp.eq.s32.totalorder %s27, 1
      %p260 = scmp.ne.s32.totalorder %s255, %s257
      %p261 = scmp.eq.s32.totalorder %s27, 0
      %p262 = por %p260, %p261
      %p263 = scmp.ne.s32.totalorder %s255, %s257
      %p264 = scmp.eq.s32.totalorder %s32, 1
      %p265 = por %p263, %p264
      %p266 = scmp.ne.s32.totalorder %s257, %s258
      %p267 = scmp.eq.s32.totalorder %s32, 0
      %p268 = por %p266, %p267
      %p269 = scmp.ne.s32.totalorder %s257, %s258
      %p270 = scmp.eq.s32.totalorder %s33, 1
      %p271 = por %p269, %p270
      %p273 = scmp.ne.s32.totalorder %s258, %s272
      %p274 = scmp.eq.s32.totalorder %s33, 0
      %p275 = por %p273, %p274
      %s276 = ssub.s32 %s27, %s34
      %p277 = scmp.eq.s32.totalorder %s276, 0
      %s279 = sadd.s32 %s278, 1
      %s280 = scalar_select %p277, %s278, %s279
      %p283 = pneg %p277
      %p284 = scmp.eq.s32.totalorder %s27, 1
      %p285 = por %p283, %p284
      %p286 = scmp.ne.s32.totalorder %s278, %s281
      %p287 = scmp.eq.s32.totalorder %s27, 0
      %p288 = por %p286, %p287
      %p289 = scmp.ne.s32.totalorder %s278, %s281
      %p290 = scmp.eq.s32.totalorder %s32, 1
      %p291 = por %p289, %p290
      %p292 = scmp.ne.s32.totalorder %s281, %s282
      %p293 = scmp.eq.s32.totalorder %s32, 0
      %p294 = por %p292, %p293
      %p295 = scmp.ne.s32.totalorder %s281, %s282
      %p296 = scmp.eq.s32.totalorder %s33, 1
      %p297 = por %p295, %p296
      %p299 = scmp.ne.s32.totalorder %s282, %s298
      %p300 = scmp.eq.s32.totalorder %s33, 0
      %p301 = por %p299, %p300
      %p302 = scmp.le.s32.totalorder 1, %s27
      %p303 = scmp.lt.s32.totalorder %s27, 3
      %p304 = pnand %p302, %p303
      %p305 = pneg %p304
      // Predicated region
      $region9: #{tpu_custom_call.1} parent=5 // pred_check
        _
      $region10: #{tpu_custom_call.1} parent=5 // pred_check_branch
        %307 = sbr.rel (%p304) target = $region12
      $region11: #{tpu_custom_call.1} parent=5 // pred_region
        %s308 = ssub.s32 %s27, 1
        // Predicated region
        $region13: #{tpu_custom_call.1} parent=11 // pred_check
          %p309 = pneg %p100
        $region14: #{tpu_custom_call.1} parent=11 // pred_check_branch
          %311 = sbr.rel (%p309) target = $region16
        $region15: #{tpu_custom_call.1} parent=11 // pred_region
          %s313 = ssub.s32 4096, 4096
          %314 = vsyncadd [#allocation6], %s313
          %s315 = sshll.u32 [#allocation7], 4
          %s316 = int_to_ptr.vmem [resolvable:$true] %s315
          %321 = dma.hbm_to_vmem [thread:$0]  %s2, 4096, %s316, [#allocation6], 256, 256, 16
        $region16: #{tpu_custom_call.1} parent=11 // pred_fallthru
          _
        // Predicated region
        $region17: #{tpu_custom_call.1} parent=11 // pred_check
          %p322 = pneg %p121
        $region18: #{tpu_custom_call.1} parent=11 // pred_check_branch
          %324 = sbr.rel (%p322) target = $region20
        $region19: #{tpu_custom_call.1} parent=11 // pred_region
          %s326 = ssub.s32 4096, 4096
          %327 = vsyncadd [#allocation9], %s326
          %s328 = sshll.u32 [#allocation8], 4
          %s329 = int_to_ptr.vmem [resolvable:$true] %s328
          %334 = dma.hbm_to_vmem [thread:$0]  %s3, 4096, %s329, [#allocation9], 256, 256, 16
        $region20: #{tpu_custom_call.1} parent=11 // pred_fallthru
          _
        // Predicated region
        $region21: #{tpu_custom_call.1} parent=11 // pred_check
          %p335 = pneg %p142
        $region22: #{tpu_custom_call.1} parent=11 // pred_check_branch
          %337 = sbr.rel (%p335) target = $region24
        $region23: #{tpu_custom_call.1} parent=11 // pred_region
          %s339 = ssub.s32 128, 128
          %340 = vsyncadd [#allocation9], %s339
          %s341 = sshll.u32 [#allocation10], 4
          %s342 = int_to_ptr.vmem [resolvable:$true] %s341
          %347 = dma.hbm_to_vmem [thread:$0]  %s4, 128, %s342, [#allocation9], 64, 64, 4
        $region24: #{tpu_custom_call.1} parent=11 // pred_fallthru
          _
        // Predicated region
        $region25: #{tpu_custom_call.1} parent=11 // pred_check
          %p348 = pneg %p163
        $region26: #{tpu_custom_call.1} parent=11 // pred_check_branch
          %350 = sbr.rel (%p348) target = $region28
        $region27: #{tpu_custom_call.1} parent=11 // pred_region
          _
        $region28: #{tpu_custom_call.1} parent=11 // pred_fallthru
          _
        // Predicated region
        $region29: #{tpu_custom_call.1} parent=11 // pred_check
          %p351 = pneg %p184
        $region30: #{tpu_custom_call.1} parent=11 // pred_check_branch
          %353 = sbr.rel (%p351) target = $region32
        $region31: #{tpu_custom_call.1} parent=11 // pred_region
          _
        $region32: #{tpu_custom_call.1} parent=11 // pred_fallthru
          _
        // Predicated region
        $region33: #{tpu_custom_call.1} parent=11 // pred_check
          %p354 = pneg %p205
        $region34: #{tpu_custom_call.1} parent=11 // pred_check_branch
          %356 = sbr.rel (%p354) target = $region36
        $region35: #{tpu_custom_call.1} parent=11 // pred_region
          _
        $region36: #{tpu_custom_call.1} parent=11 // pred_fallthru
          _
        // Predicated region
        $region37: #{tpu_custom_call.1} parent=11 // pred_check
          %p357 = pneg %p226
        $region38: #{tpu_custom_call.1} parent=11 // pred_check_branch
          %359 = sbr.rel (%p357) target = $region40
        $region39: #{tpu_custom_call.1} parent=11 // pred_region
          _
        $region40: #{tpu_custom_call.1} parent=11 // pred_fallthru
          _
        // Predicated region
        $region41: #{tpu_custom_call.1} parent=11 // pred_check
          %p360 = pneg %p247
        $region42: #{tpu_custom_call.1} parent=11 // pred_check_branch
          %362 = sbr.rel (%p360) target = $region44
        $region43: #{tpu_custom_call.1} parent=11 // pred_region
          _
        $region44: #{tpu_custom_call.1} parent=11 // pred_fallthru
          _
        // Predicated region
        $region45: #{tpu_custom_call.1} parent=11 // pred_check
          %p363 = pneg %p268
        $region46: #{tpu_custom_call.1} parent=11 // pred_check_branch
          %365 = sbr.rel (%p363) target = $region48
        $region47: #{tpu_custom_call.1} parent=11 // pred_region
          _
        $region48: #{tpu_custom_call.1} parent=11 // pred_fallthru
          _
      $region12: #{tpu_custom_call.1} parent=5 // pred_fallthru
        _
      %p366 = scmp.lt.s32.totalorder %s27, 2
      // Predicated region
      $region49: #{tpu_custom_call.1} parent=5 // pred_check
        %p367 = pneg %p366
      $region50: #{tpu_custom_call.1} parent=5 // pred_check_branch
        %369 = sbr.rel (%p367) target = $region52
      $region51: #{tpu_custom_call.1} parent=5 // pred_region
        // Predicated region
        $region53: #{tpu_custom_call.1} parent=51 // pred_check
          %p370 = pneg %p47
        $region54: #{tpu_custom_call.1} parent=51 // pred_check_branch
          %372 = sbr.rel (%p370) target = $region56
        $region55: #{tpu_custom_call.1} parent=51 // pred_region
          %s373 = sand.u32 %s37, 1
          %s374 = scalar_lea.sflag [#allocation3], %s373
          %s375 = sand.u32 %s37, 1
          %s376 = smul.addr %s375, 16
          %s377 = scalar_lea.vmem [#allocation2], %s376
          %s378 = smul.u32 2, %s27
          %s380 = ssub.s32 256, 256
          %381 = vsyncadd %s374, %s380
          %s382 = smul.addr %s378, 128
          %s383 = scalar_lea.hbm %s0, %s382
          %s384 = sshll.u32 %s377, 4
          %s385 = int_to_ptr.vmem [resolvable:$true] %s384
          %390 = dma.hbm_to_vmem [thread:$0]  %s383, 256, %s385, %s374, 128, 128, 8
        $region56: #{tpu_custom_call.1} parent=51 // pred_fallthru
          _
        // Predicated region
        $region57: #{tpu_custom_call.1} parent=51 // pred_check
          %p391 = pneg %p73
        $region58: #{tpu_custom_call.1} parent=51 // pred_check_branch
          %393 = sbr.rel (%p391) target = $region60
        $region59: #{tpu_custom_call.1} parent=51 // pred_region
          %s394 = sand.u32 %s27, 1
          %s395 = scalar_lea.sflag [#allocation6], %s394
          %s396 = sand.u32 %s63, 1
          %s397 = smul.addr %s396, 16
          %s398 = scalar_lea.vmem [#allocation5], %s397
          %s399 = smul.u32 2, %s27
          %s401 = ssub.s32 256, 256
          %402 = vsyncadd %s395, %s401
          %s403 = smul.addr %s399, 2
          %s404 = smul.addr %s403, 64
          %s405 = scalar_lea.hbm %s1, %s404
          %s406 = sshll.u32 %s398, 4
          %s407 = int_to_ptr.vmem [resolvable:$true] %s406
          %412 = dma.hbm_to_vmem [thread:$0]  %s405, 256, %s407, %s395, 128, 128, 8
        $region60: #{tpu_custom_call.1} parent=51 // pred_fallthru
          _
      $region52: #{tpu_custom_call.1} parent=5 // pred_fallthru
        _
      %p413 = scmp.le.s32.totalorder 1, %s27
      %p414 = scmp.lt.s32.totalorder %s27, 3
      %p415 = pnand %p413, %p414
      %p416 = pneg %p415
      // Predicated region
      $region61: #{tpu_custom_call.1} parent=5 // pred_check
        _
      $region62: #{tpu_custom_call.1} parent=5 // pred_check_branch
        %418 = sbr.rel (%p415) target = $region64
      $region63: #{tpu_custom_call.1} parent=5 // pred_region
        %s419 = ssub.s32 %s27, 1
        %s420 = sand.u32 %s40, 1
        %s421 = scalar_lea.sflag [#allocation3], %s420
        %s422 = sand.u32 %s40, 1
        %s423 = smul.addr %s422, 16
        %s424 = scalar_lea.vmem [#allocation2], %s423
        // Predicated region
        $region65: #{tpu_custom_call.1} parent=63 // pred_check
          %p425 = pneg %p53
        $region66: #{tpu_custom_call.1} parent=63 // pred_check_branch
          %427 = sbr.rel (%p425) target = $region68
        $region67: #{tpu_custom_call.1} parent=63 // pred_region
          %428 = dma.done %s421, 256
        $region68: #{tpu_custom_call.1} parent=63 // pred_fallthru
          _
        %s429 = sand.u32 %s32, 1
        %s430 = scalar_lea.sflag [#allocation6], %s429
        %s431 = sand.u32 %s66, 1
        %s432 = smul.addr %s431, 16
        %s433 = scalar_lea.vmem [#allocation5], %s432
        // Predicated region
        $region69: #{tpu_custom_call.1} parent=63 // pred_check
          %p434 = pneg %p79
        $region70: #{tpu_custom_call.1} parent=63 // pred_check_branch
          %436 = sbr.rel (%p434) target = $region72
        $region71: #{tpu_custom_call.1} parent=63 // pred_region
          %437 = dma.done %s430, 256
        $region72: #{tpu_custom_call.1} parent=63 // pred_fallthru
          _
        // Predicated region
        $region73: #{tpu_custom_call.1} parent=63 // pred_check
          %p438 = pneg %p100
        $region74: #{tpu_custom_call.1} parent=63 // pred_check_branch
          %440 = sbr.rel (%p438) target = $region76
        $region75: #{tpu_custom_call.1} parent=63 // pred_region
          %441 = dma.done [#allocation6], 4096
        $region76: #{tpu_custom_call.1} parent=63 // pred_fallthru
          _
        // Predicated region
        $region77: #{tpu_custom_call.1} parent=63 // pred_check
          %p442 = pneg %p121
        $region78: #{tpu_custom_call.1} parent=63 // pred_check_branch
          %444 = sbr.rel (%p442) target = $region80
        $region79: #{tpu_custom_call.1} parent=63 // pred_region
          %445 = dma.done [#allocation9], 4096
        $region80: #{tpu_custom_call.1} parent=63 // pred_fallthru
          _
        // Predicated region
        $region81: #{tpu_custom_call.1} parent=63 // pred_check
          %p446 = pneg %p142
        $region82: #{tpu_custom_call.1} parent=63 // pred_check_branch
          %448 = sbr.rel (%p446) target = $region84
        $region83: #{tpu_custom_call.1} parent=63 // pred_region
          %449 = dma.done [#allocation9], 128
        $region84: #{tpu_custom_call.1} parent=63 // pred_fallthru
          _
        %s450 = sand.u32 %s40, 1
        %s451 = scalar_lea.sflag [#allocation3], %s450
        %s452 = sand.u32 %s40, 1
        %s453 = smul.addr %s452, 16
        %s454 = scalar_lea.vmem [#allocation2], %s453
        %p455 = pneg %p53
        %p456 = pneg %p50
        %s457 = sand.u32 %s32, 1
        %s458 = scalar_lea.sflag [#allocation6], %s457
        %s459 = sand.u32 %s66, 1
        %s460 = smul.addr %s459, 16
        %s461 = scalar_lea.vmem [#allocation5], %s460
        %p462 = pneg %p79
        %p463 = pneg %p76
        %p464 = pneg %p100
        %p465 = pneg %p97
        %p466 = pneg %p121
        %p467 = pneg %p118
        %p468 = pneg %p142
        %p469 = pneg %p139
        %p470 = pneg %p163
        %p471 = pneg %p160
        %p472 = pneg %p184
        %p473 = pneg %p181
        %p474 = pneg %p205
        %p475 = pneg %p202
        %p476 = pneg %p226
        %p477 = pneg %p223
        %p478 = pneg %p247
        %p479 = pneg %p244
        %p480 = pneg %p268
        %p481 = pneg %p265
        %p482 = pneg %p294
        %p483 = pneg %p291
        %s484 = sand.u32 %s281, 1
        %s485 = scalar_lea.sflag [#allocation4], %s484
        %s486 = sand.u32 %s281, 1
        %s487 = smul.addr %s486, 16
        %s488 = scalar_lea.vmem [#allocation11], %s487
        %s489 = smul.u32 2, %s32
        %s490 = smul.u32 2, %s32
        %s491 = smul.u32 2, %s32
        %v492 = vld [vmem:[%s424] sm:$0xff]
        %s493 = scalar_lea.vmem %s424, 8 [#allocation2]
        %v494 = vld [vmem:[%s493] sm:$0xff]
        %v495 = vld [vmem:[%s433] sm:$0xff]
        %s496 = scalar_lea.vmem %s433, 8 [#allocation5]
        %v497 = vld [vmem:[%s496] sm:$0xff]
        %v499 = vcombine.high %v495, %v495
        %v502 = vcombine.high %v497, %v497
        %v504 = vld [vmem:[#allocation10] sm:$0xf]
        %vm505 = vcmask 64512
        %v507 = vsel %vm505, %v504, 0
        %509 = vmatprep.subr.mxu0 %v494
        %510 = vmatpush1.msra.mxu0 %v492
        %511 = vmatprep.subr.mxu0 0.0
        %512 = vmatpush1.msra.mxu0 0.0
        %513 = vmatprep.subr.mxu0 0.0
        %514 = vmatpush1.msra.mxu0 0.0
        %515 = vmatprep.subr.mxu0 0.0
        %516 = vmatpush1.msra.mxu0 0.0
        %517 = vmatprep.subr.mxu0 0.0
        %518 = vmatpush1.msra.mxu0 0.0
        %519 = vmatprep.subr.mxu0 0.0
        %520 = vmatpush1.msra.mxu0 0.0
        %521 = vmatprep.subr.mxu0 0.0
        %522 = vmatpush1.msra.mxu0 0.0
        %523 = vmatprep.subr.mxu0 0.0
        %524 = vmatpush1.msra.mxu0 0.0
        %525 = vmatprep.subr.mxu0 0.0
        %526 = vmatpush1.msra.mxu0 0.0
        %527 = vmatprep.subr.mxu0 0.0
        %528 = vmatpush1.msra.mxu0 0.0
        %529 = vmatprep.subr.mxu0 0.0
        %530 = vmatpush1.msra.mxu0 0.0
        %531 = vmatprep.subr.mxu0 0.0
        %532 = vmatpush1.msra.mxu0 0.0
        %533 = vmatprep.subr.mxu0 0.0
        %534 = vmatpush1.msra.mxu0 0.0
        %535 = vmatprep.subr.mxu0 0.0
        %536 = vmatpush1.msra.mxu0 0.0
        %537 = vmatprep.subr.mxu0 0.0
        %538 = vmatpush1.msra.mxu0 0.0
        %539 = vmatprep.subr.mxu0 0.0
        %540 = vmatpush1.msra.mxu0 0.0
        %541 = vmatprep.subr.mxu0 0.0
        %542 = vmatpush1.msra.mxu0 0.0
        %543 = vmatprep.subr.mxu0 0.0
        %544 = vmatpush1.msra.mxu0 0.0
        %545 = vmatprep.subr.mxu0 0.0
        %546 = vmatpush1.msra.mxu0 0.0
        %547 = vmatprep.subr.mxu0 0.0
        %548 = vmatpush1.msra.mxu0 0.0
        %549 = vmatprep.subr.mxu0 0.0
        %550 = vmatpush1.msra.mxu0 0.0
        %551 = vmatprep.subr.mxu0 0.0
        %552 = vmatpush1.msra.mxu0 0.0
        %553 = vmatprep.subr.mxu0 0.0
        %554 = vmatpush1.msra.mxu0 0.0
        %555 = vmatprep.subr.mxu0 0.0
        %556 = vmatpush1.msra.mxu0 0.0
        %557 = vmatprep.subr.mxu0 0.0
        %558 = vmatpush1.msra.mxu0 0.0
        %559 = vmatprep.subr.mxu0 0.0
        %560 = vmatpush1.msra.mxu0 0.0
        %561 = vmatprep.subr.mxu0 0.0
        %562 = vmatpush1.msra.mxu0 0.0
        %563 = vmatprep.subr.mxu0 0.0
        %564 = vmatpush1.msra.mxu0 0.0
        %565 = vmatprep.subr.mxu0 0.0
        %566 = vmatpush1.msra.mxu0 0.0
        %567 = vmatprep.subr.mxu0 0.0
        %568 = vmatpush1.msra.mxu0 0.0
        %569 = vmatprep.subr.mxu0 0.0
        %570 = vmatpush1.msra.mxu0 0.0
        %571 = vmatprep.subr.mxu0 0.0
        %572 = vmatpush1.msra.mxu0 0.0
        %573 = vmatprep.mubr.f32.mxu0 0.0
        %574 = vmatmul.mubr.f32.gmra.mrb[0].mxu0 %v507
        %v575 = vpop.f32.mrb[0].mxu0
        %v576 = vadd.f32 0.0, %v575
        %v577 = vpop.f32.mrb[0].mxu0
        %v578 = vadd.f32 0.0, %v577
        %579 = vdwg.mxu0
        %s580 = scalar_lea.vmem [#allocation10], 4
        %v581 = vld [vmem:[%s580] sm:$0xf]
        %v583 = vsel %vm505, %v581, 0
        %585 = vmatprep.subr.mxu0 %v494
        %586 = vmatpush1.msra.mxu0 %v492
        %587 = vmatprep.subr.mxu0 0.0
        %588 = vmatpush1.msra.mxu0 0.0
        %589 = vmatprep.subr.mxu0 0.0
        %590 = vmatpush1.msra.mxu0 0.0
        %591 = vmatprep.subr.mxu0 0.0
        %592 = vmatpush1.msra.mxu0 0.0
        %593 = vmatprep.subr.mxu0 0.0
        %594 = vmatpush1.msra.mxu0 0.0
        %595 = vmatprep.subr.mxu0 0.0
        %596 = vmatpush1.msra.mxu0 0.0
        %597 = vmatprep.subr.mxu0 0.0
        %598 = vmatpush1.msra.mxu0 0.0
        %599 = vmatprep.subr.mxu0 0.0
        %600 = vmatpush1.msra.mxu0 0.0
        %601 = vmatprep.subr.mxu0 0.0
        %602 = vmatpush1.msra.mxu0 0.0
        %603 = vmatprep.subr.mxu0 0.0
        %604 = vmatpush1.msra.mxu0 0.0
        %605 = vmatprep.subr.mxu0 0.0
        %606 = vmatpush1.msra.mxu0 0.0
        %607 = vmatprep.subr.mxu0 0.0
        %608 = vmatpush1.msra.mxu0 0.0
        %609 = vmatprep.subr.mxu0 0.0
        %610 = vmatpush1.msra.mxu0 0.0
        %611 = vmatprep.subr.mxu0 0.0
        %612 = vmatpush1.msra.mxu0 0.0
        %613 = vmatprep.subr.mxu0 0.0
        %614 = vmatpush1.msra.mxu0 0.0
        %615 = vmatprep.subr.mxu0 0.0
        %616 = vmatpush1.msra.mxu0 0.0
        %617 = vmatprep.subr.mxu0 0.0
        %618 = vmatpush1.msra.mxu0 0.0
        %619 = vmatprep.subr.mxu0 0.0
        %620 = vmatpush1.msra.mxu0 0.0
        %621 = vmatprep.subr.mxu0 0.0
        %622 = vmatpush1.msra.mxu0 0.0
        %623 = vmatprep.subr.mxu0 0.0
        %624 = vmatpush1.msra.mxu0 0.0
        %625 = vmatprep.subr.mxu0 0.0
        %626 = vmatpush1.msra.mxu0 0.0
        %627 = vmatprep.subr.mxu0 0.0
        %628 = vmatpush1.msra.mxu0 0.0
        %629 = vmatprep.subr.mxu0 0.0
        %630 = vmatpush1.msra.mxu0 0.0
        %631 = vmatprep.subr.mxu0 0.0
        %632 = vmatpush1.msra.mxu0 0.0
        %633 = vmatprep.subr.mxu0 0.0
        %634 = vmatpush1.msra.mxu0 0.0
        %635 = vmatprep.subr.mxu0 0.0
        %636 = vmatpush1.msra.mxu0 0.0
        %637 = vmatprep.subr.mxu0 0.0
        %638 = vmatpush1.msra.mxu0 0.0
        %639 = vmatprep.subr.mxu0 0.0
        %640 = vmatpush1.msra.mxu0 0.0
        %641 = vmatprep.subr.mxu0 0.0
        %642 = vmatpush1.msra.mxu0 0.0
        %643 = vmatprep.subr.mxu0 0.0
        %644 = vmatpush1.msra.mxu0 0.0
        %645 = vmatprep.subr.mxu0 0.0
        %646 = vmatpush1.msra.mxu0 0.0
        %647 = vmatprep.subr.mxu0 0.0
        %648 = vmatpush1.msra.mxu0 0.0
        %649 = vmatprep.mubr.f32.mxu0 0.0
        %650 = vmatmul.mubr.f32.gmra.mrb[0].mxu0 %v583
        %v651 = vpop.f32.mrb[0].mxu0
        %v652 = vadd.f32 0.0, %v651
        %v653 = vpop.f32.mrb[0].mxu0
        %v654 = vadd.f32 0.0, %v653
        %655 = vdwg.mxu0
        %v656 = vld [vmem:[#allocation7] sm:$0xff]
        %v657 = vld [vmem:[#allocation7 + $0x8] sm:$0xff]
        %v658 = vld [vmem:[#allocation7 + $0x10] sm:$0xff]
        %v659 = vld [vmem:[#allocation7 + $0x18] sm:$0xff]
        %v660 = vld [vmem:[#allocation7 + $0x20] sm:$0xff]
        %v661 = vld [vmem:[#allocation7 + $0x28] sm:$0xff]
        %v662 = vld [vmem:[#allocation7 + $0x30] sm:$0xff]
        %v663 = vld [vmem:[#allocation7 + $0x38] sm:$0xff]
        %v664 = vld [vmem:[#allocation7 + $0x40] sm:$0xff]
        %v665 = vld [vmem:[#allocation7 + $0x48] sm:$0xff]
        %v666 = vld [vmem:[#allocation7 + $0x50] sm:$0xff]
        %v667 = vld [vmem:[#allocation7 + $0x58] sm:$0xff]
        %v668 = vld [vmem:[#allocation7 + $0x60] sm:$0xff]
        %v669 = vld [vmem:[#allocation7 + $0x68] sm:$0xff]
        %v670 = vld [vmem:[#allocation7 + $0x70] sm:$0xff]
        %v671 = vld [vmem:[#allocation7 + $0x78] sm:$0xff]
        %v672 = vld [vmem:[#allocation7 + $0x80] sm:$0xff]
        %v673 = vld [vmem:[#allocation7 + $0x88] sm:$0xff]
        %v674 = vld [vmem:[#allocation7 + $0x90] sm:$0xff]
        %v675 = vld [vmem:[#allocation7 + $0x98] sm:$0xff]
        %v676 = vld [vmem:[#allocation7 + $0xa0] sm:$0xff]
        %v677 = vld [vmem:[#allocation7 + $0xa8] sm:$0xff]
        %v678 = vld [vmem:[#allocation7 + $0xb0] sm:$0xff]
        %v679 = vld [vmem:[#allocation7 + $0xb8] sm:$0xff]
        %v680 = vld [vmem:[#allocation7 + $0xc0] sm:$0xff]
        %v681 = vld [vmem:[#allocation7 + $0xc8] sm:$0xff]
        %v682 = vld [vmem:[#allocation7 + $0xd0] sm:$0xff]
        %v683 = vld [vmem:[#allocation7 + $0xd8] sm:$0xff]
        %v684 = vld [vmem:[#allocation7 + $0xe0] sm:$0xff]
        %v685 = vld [vmem:[#allocation7 + $0xe8] sm:$0xff]
        %v686 = vld [vmem:[#allocation7 + $0xf0] sm:$0xff]
        %v687 = vld [vmem:[#allocation7 + $0xf8] sm:$0xff]
        %v688 = vld [vmem:[#allocation8] sm:$0xff]
        %v689 = vld [vmem:[#allocation8 + $0x8] sm:$0xff]
        %v690 = vld [vmem:[#allocation8 + $0x10] sm:$0xff]
        %v691 = vld [vmem:[#allocation8 + $0x18] sm:$0xff]
        %v692 = vld [vmem:[#allocation8 + $0x20] sm:$0xff]
        %v693 = vld [vmem:[#allocation8 + $0x28] sm:$0xff]
        %v694 = vld [vmem:[#allocation8 + $0x30] sm:$0xff]
        %v695 = vld [vmem:[#allocation8 + $0x38] sm:$0xff]
        %v696 = vld [vmem:[#allocation8 + $0x40] sm:$0xff]
        %v697 = vld [vmem:[#allocation8 + $0x48] sm:$0xff]
        %v698 = vld [vmem:[#allocation8 + $0x50] sm:$0xff]
        %v699 = vld [vmem:[#allocation8 + $0x58] sm:$0xff]
        %v700 = vld [vmem:[#allocation8 + $0x60] sm:$0xff]
        %v701 = vld [vmem:[#allocation8 + $0x68] sm:$0xff]
        %v702 = vld [vmem:[#allocation8 + $0x70] sm:$0xff]
        %v703 = vld [vmem:[#allocation8 + $0x78] sm:$0xff]
        %v704 = vld [vmem:[#allocation8 + $0x80] sm:$0xff]
        %v705 = vld [vmem:[#allocation8 + $0x88] sm:$0xff]
        %v706 = vld [vmem:[#allocation8 + $0x90] sm:$0xff]
        %v707 = vld [vmem:[#allocation8 + $0x98] sm:$0xff]
        %v708 = vld [vmem:[#allocation8 + $0xa0] sm:$0xff]
        %v709 = vld [vmem:[#allocation8 + $0xa8] sm:$0xff]
        %v710 = vld [vmem:[#allocation8 + $0xb0] sm:$0xff]
        %v711 = vld [vmem:[#allocation8 + $0xb8] sm:$0xff]
        %v712 = vld [vmem:[#allocation8 + $0xc0] sm:$0xff]
        %v713 = vld [vmem:[#allocation8 + $0xc8] sm:$0xff]
        %v714 = vld [vmem:[#allocation8 + $0xd0] sm:$0xff]
        %v715 = vld [vmem:[#allocation8 + $0xd8] sm:$0xff]
        %v716 = vld [vmem:[#allocation8 + $0xe0] sm:$0xff]
        %v717 = vld [vmem:[#allocation8 + $0xe8] sm:$0xff]
        %v718 = vld [vmem:[#allocation8 + $0xf0] sm:$0xff]
        %v719 = vld [vmem:[#allocation8 + $0xf8] sm:$0xff]
        %720 = vmatprep.subr.mxu0 %v689
        %721 = vmatpush1.msra.mxu0 %v688
        %722 = vmatprep.subr.mxu0 %v691
        %723 = vmatpush1.msra.mxu0 %v690
        %724 = vmatprep.subr.mxu0 %v693
        %725 = vmatpush1.msra.mxu0 %v692
        %726 = vmatprep.subr.mxu0 %v695
        %727 = vmatpush1.msra.mxu0 %v694
        %728 = vmatprep.subr.mxu0 %v697
        %729 = vmatpush1.msra.mxu0 %v696
        %730 = vmatprep.subr.mxu0 %v699
        %731 = vmatpush1.msra.mxu0 %v698
        %732 = vmatprep.subr.mxu0 %v701
        %733 = vmatpush1.msra.mxu0 %v700
        %734 = vmatprep.subr.mxu0 %v703
        %735 = vmatpush1.msra.mxu0 %v702
        %736 = vmatprep.subr.mxu0 %v705
        %737 = vmatpush1.msra.mxu0 %v704
        %738 = vmatprep.subr.mxu0 %v707
        %739 = vmatpush1.msra.mxu0 %v706
        %740 = vmatprep.subr.mxu0 %v709
        %741 = vmatpush1.msra.mxu0 %v708
        %742 = vmatprep.subr.mxu0 %v711
        %743 = vmatpush1.msra.mxu0 %v710
        %744 = vmatprep.subr.mxu0 %v713
        %745 = vmatpush1.msra.mxu0 %v712
        %746 = vmatprep.subr.mxu0 %v715
        %747 = vmatpush1.msra.mxu0 %v714
        %748 = vmatprep.subr.mxu0 %v717
        %749 = vmatpush1.msra.mxu0 %v716
        %750 = vmatprep.subr.mxu0 %v719
        %751 = vmatpush1.msra.mxu0 %v718
        %752 = vmatprep.subr.mxu0 0.0
        %753 = vmatpush1.msra.mxu0 0.0
        %754 = vmatprep.subr.mxu0 0.0
        %755 = vmatpush1.msra.mxu0 0.0
        %756 = vmatprep.subr.mxu0 0.0
        %757 = vmatpush1.msra.mxu0 0.0
        %758 = vmatprep.subr.mxu0 0.0
        %759 = vmatpush1.msra.mxu0 0.0
        %760 = vmatprep.subr.mxu0 0.0
        %761 = vmatpush1.msra.mxu0 0.0
        %762 = vmatprep.subr.mxu0 0.0
        %763 = vmatpush1.msra.mxu0 0.0
        %764 = vmatprep.subr.mxu0 0.0
        %765 = vmatpush1.msra.mxu0 0.0
        %766 = vmatprep.subr.mxu0 0.0
        %767 = vmatpush1.msra.mxu0 0.0
        %768 = vmatprep.subr.mxu0 0.0
        %769 = vmatpush1.msra.mxu0 0.0
        %770 = vmatprep.subr.mxu0 0.0
        %771 = vmatpush1.msra.mxu0 0.0
        %772 = vmatprep.subr.mxu0 0.0
        %773 = vmatpush1.msra.mxu0 0.0
        %774 = vmatprep.subr.mxu0 0.0
        %775 = vmatpush1.msra.mxu0 0.0
        %776 = vmatprep.subr.mxu0 0.0
        %777 = vmatpush1.msra.mxu0 0.0
        %778 = vmatprep.subr.mxu0 0.0
        %779 = vmatpush1.msra.mxu0 0.0
        %780 = vmatprep.subr.mxu0 0.0
        %781 = vmatpush1.msra.mxu0 0.0
        %782 = vmatprep.subr.mxu0 0.0
        %783 = vmatpush1.msra.mxu0 0.0
        %784 = vmatprep.mubr.f32.mxu0 0.0
        %785 = vmatmul.mubr.f32.gmra.mrb[0].mxu0 %v652
        %v786 = vpop.f32.mrb[0].mxu0
        %v787 = vadd.f32 0.0, %v786
        %v788 = vpop.f32.mrb[0].mxu0
        %v789 = vadd.f32 0.0, %v788
        %790 = vdwg.mxu0
        %791 = vmatprep.subr.mxu0 %v657
        %792 = vmatpush1.msra.mxu0 %v656
        %793 = vmatprep.subr.mxu0 %v659
        %794 = vmatpush1.msra.mxu0 %v658
        %795 = vmatprep.subr.mxu0 %v661
        %796 = vmatpush1.msra.mxu0 %v660
        %797 = vmatprep.subr.mxu0 %v663
        %798 = vmatpush1.msra.mxu0 %v662
        %799 = vmatprep.subr.mxu0 %v665
        %800 = vmatpush1.msra.mxu0 %v664
        %801 = vmatprep.subr.mxu0 %v667
        %802 = vmatpush1.msra.mxu0 %v666
        %803 = vmatprep.subr.mxu0 %v669
        %804 = vmatpush1.msra.mxu0 %v668
        %805 = vmatprep.subr.mxu0 %v671
        %806 = vmatpush1.msra.mxu0 %v670
        %807 = vmatprep.subr.mxu0 %v673
        %808 = vmatpush1.msra.mxu0 %v672
        %809 = vmatprep.subr.mxu0 %v675
        %810 = vmatpush1.msra.mxu0 %v674
        %811 = vmatprep.subr.mxu0 %v677
        %812 = vmatpush1.msra.mxu0 %v676
        %813 = vmatprep.subr.mxu0 %v679
        %814 = vmatpush1.msra.mxu0 %v678
        %815 = vmatprep.subr.mxu0 %v681
        %816 = vmatpush1.msra.mxu0 %v680
        %817 = vmatprep.subr.mxu0 %v683
        %818 = vmatpush1.msra.mxu0 %v682
        %819 = vmatprep.subr.mxu0 %v685
        %820 = vmatpush1.msra.mxu0 %v684
        %821 = vmatprep.subr.mxu0 %v687
        %822 = vmatpush1.msra.mxu0 %v686
        %823 = vmatprep.subr.mxu0 0.0
        %824 = vmatpush1.msra.mxu0 0.0
        %825 = vmatprep.subr.mxu0 0.0
        %826 = vmatpush1.msra.mxu0 0.0
        %827 = vmatprep.subr.mxu0 0.0
        %828 = vmatpush1.msra.mxu0 0.0
        %829 = vmatprep.subr.mxu0 0.0
        %830 = vmatpush1.msra.mxu0 0.0
        %831 = vmatprep.subr.mxu0 0.0
        %832 = vmatpush1.msra.mxu0 0.0
        %833 = vmatprep.subr.mxu0 0.0
        %834 = vmatpush1.msra.mxu0 0.0
        %835 = vmatprep.subr.mxu0 0.0
        %836 = vmatpush1.msra.mxu0 0.0
        %837 = vmatprep.subr.mxu0 0.0
        %838 = vmatpush1.msra.mxu0 0.0
        %839 = vmatprep.subr.mxu0 0.0
        %840 = vmatpush1.msra.mxu0 0.0
        %841 = vmatprep.subr.mxu0 0.0
        %842 = vmatpush1.msra.mxu0 0.0
        %843 = vmatprep.subr.mxu0 0.0
        %844 = vmatpush1.msra.mxu0 0.0
        %845 = vmatprep.subr.mxu0 0.0
        %846 = vmatpush1.msra.mxu0 0.0
        %847 = vmatprep.subr.mxu0 0.0
        %848 = vmatpush1.msra.mxu0 0.0
        %849 = vmatprep.subr.mxu0 0.0
        %850 = vmatpush1.msra.mxu0 0.0
        %851 = vmatprep.subr.mxu0 0.0
        %852 = vmatpush1.msra.mxu0 0.0
        %853 = vmatprep.subr.mxu0 0.0
        %854 = vmatpush1.msra.mxu0 0.0
        %855 = vmatprep.mubr.f32.mxu0 0.0
        %856 = vmatmul.mubr.f32.gmra.mrb[0].mxu0 %v576
        %v857 = vpop.f32.mrb[0].mxu0
        %v858 = vadd.f32 %v787, %v857
        %v859 = vpop.f32.mrb[0].mxu0
        %v860 = vadd.f32 %v789, %v859
        %861 = vdwg.mxu0
        %862 = vmatprep.subr.mxu0 %v689
        %863 = vmatpush1.msra.mxu0 %v688
        %864 = vmatprep.subr.mxu0 %v691
        %865 = vmatpush1.msra.mxu0 %v690
        %866 = vmatprep.subr.mxu0 %v693
        %867 = vmatpush1.msra.mxu0 %v692
        %868 = vmatprep.subr.mxu0 %v695
        %869 = vmatpush1.msra.mxu0 %v694
        %870 = vmatprep.subr.mxu0 %v697
        %871 = vmatpush1.msra.mxu0 %v696
        %872 = vmatprep.subr.mxu0 %v699
        %873 = vmatpush1.msra.mxu0 %v698
        %874 = vmatprep.subr.mxu0 %v701
        %875 = vmatpush1.msra.mxu0 %v700
        %876 = vmatprep.subr.mxu0 %v703
        %877 = vmatpush1.msra.mxu0 %v702
        %878 = vmatprep.subr.mxu0 %v705
        %879 = vmatpush1.msra.mxu0 %v704
        %880 = vmatprep.subr.mxu0 %v707
        %881 = vmatpush1.msra.mxu0 %v706
        %882 = vmatprep.subr.mxu0 %v709
        %883 = vmatpush1.msra.mxu0 %v708
        %884 = vmatprep.subr.mxu0 %v711
        %885 = vmatpush1.msra.mxu0 %v710
        %886 = vmatprep.subr.mxu0 %v713
        %887 = vmatpush1.msra.mxu0 %v712
        %888 = vmatprep.subr.mxu0 %v715
        %889 = vmatpush1.msra.mxu0 %v714
        %890 = vmatprep.subr.mxu0 %v717
        %891 = vmatpush1.msra.mxu0 %v716
        %892 = vmatprep.subr.mxu0 %v719
        %893 = vmatpush1.msra.mxu0 %v718
        %894 = vmatprep.subr.mxu0 0.0
        %895 = vmatpush1.msra.mxu0 0.0
        %896 = vmatprep.subr.mxu0 0.0
        %897 = vmatpush1.msra.mxu0 0.0
        %898 = vmatprep.subr.mxu0 0.0
        %899 = vmatpush1.msra.mxu0 0.0
        %900 = vmatprep.subr.mxu0 0.0
        %901 = vmatpush1.msra.mxu0 0.0
        %902 = vmatprep.subr.mxu0 0.0
        %903 = vmatpush1.msra.mxu0 0.0
        %904 = vmatprep.subr.mxu0 0.0
        %905 = vmatpush1.msra.mxu0 0.0
        %906 = vmatprep.subr.mxu0 0.0
        %907 = vmatpush1.msra.mxu0 0.0
        %908 = vmatprep.subr.mxu0 0.0
        %909 = vmatpush1.msra.mxu0 0.0
        %910 = vmatprep.subr.mxu0 0.0
        %911 = vmatpush1.msra.mxu0 0.0
        %912 = vmatprep.subr.mxu0 0.0
        %913 = vmatpush1.msra.mxu0 0.0
        %914 = vmatprep.subr.mxu0 0.0
        %915 = vmatpush1.msra.mxu0 0.0
        %916 = vmatprep.subr.mxu0 0.0
        %917 = vmatpush1.msra.mxu0 0.0
        %918 = vmatprep.subr.mxu0 0.0
        %919 = vmatpush1.msra.mxu0 0.0
        %920 = vmatprep.subr.mxu0 0.0
        %921 = vmatpush1.msra.mxu0 0.0
        %922 = vmatprep.subr.mxu0 0.0
        %923 = vmatpush1.msra.mxu0 0.0
        %924 = vmatprep.subr.mxu0 0.0
        %925 = vmatpush1.msra.mxu0 0.0
        %926 = vmatprep.mubr.f32.mxu0 0.0
        %927 = vmatmul.mubr.f32.gmra.mrb[0].mxu0 %v654
        %v928 = vpop.f32.mrb[0].mxu0
        %v929 = vadd.f32 0.0, %v928
        %v930 = vpop.f32.mrb[0].mxu0
        %v931 = vadd.f32 0.0, %v930
        %932 = vdwg.mxu0
        %933 = vmatprep.subr.mxu0 %v657
        %934 = vmatpush1.msra.mxu0 %v656
        %935 = vmatprep.subr.mxu0 %v659
        %936 = vmatpush1.msra.mxu0 %v658
        %937 = vmatprep.subr.mxu0 %v661
        %938 = vmatpush1.msra.mxu0 %v660
        %939 = vmatprep.subr.mxu0 %v663
        %940 = vmatpush1.msra.mxu0 %v662
        %941 = vmatprep.subr.mxu0 %v665
        %942 = vmatpush1.msra.mxu0 %v664
        %943 = vmatprep.subr.mxu0 %v667
        %944 = vmatpush1.msra.mxu0 %v666
        %945 = vmatprep.subr.mxu0 %v669
        %946 = vmatpush1.msra.mxu0 %v668
        %947 = vmatprep.subr.mxu0 %v671
        %948 = vmatpush1.msra.mxu0 %v670
        %949 = vmatprep.subr.mxu0 %v673
        %950 = vmatpush1.msra.mxu0 %v672
        %951 = vmatprep.subr.mxu0 %v675
        %952 = vmatpush1.msra.mxu0 %v674
        %953 = vmatprep.subr.mxu0 %v677
        %954 = vmatpush1.msra.mxu0 %v676
        %955 = vmatprep.subr.mxu0 %v679
        %956 = vmatpush1.msra.mxu0 %v678
        %957 = vmatprep.subr.mxu0 %v681
        %958 = vmatpush1.msra.mxu0 %v680
        %959 = vmatprep.subr.mxu0 %v683
        %960 = vmatpush1.msra.mxu0 %v682
        %961 = vmatprep.subr.mxu0 %v685
        %962 = vmatpush1.msra.mxu0 %v684
        %963 = vmatprep.subr.mxu0 %v687
        %964 = vmatpush1.msra.mxu0 %v686
        %965 = vmatprep.subr.mxu0 0.0
        %966 = vmatpush1.msra.mxu0 0.0
        %967 = vmatprep.subr.mxu0 0.0
        %968 = vmatpush1.msra.mxu0 0.0
        %969 = vmatprep.subr.mxu0 0.0
        %970 = vmatpush1.msra.mxu0 0.0
        %971 = vmatprep.subr.mxu0 0.0
        %972 = vmatpush1.msra.mxu0 0.0
        %973 = vmatprep.subr.mxu0 0.0
        %974 = vmatpush1.msra.mxu0 0.0
        %975 = vmatprep.subr.mxu0 0.0
        %976 = vmatpush1.msra.mxu0 0.0
        %977 = vmatprep.subr.mxu0 0.0
        %978 = vmatpush1.msra.mxu0 0.0
        %979 = vmatprep.subr.mxu0 0.0
        %980 = vmatpush1.msra.mxu0 0.0
        %981 = vmatprep.subr.mxu0 0.0
        %982 = vmatpush1.msra.mxu0 0.0
        %983 = vmatprep.subr.mxu0 0.0
        %984 = vmatpush1.msra.mxu0 0.0
        %985 = vmatprep.subr.mxu0 0.0
        %986 = vmatpush1.msra.mxu0 0.0
        %987 = vmatprep.subr.mxu0 0.0
        %988 = vmatpush1.msra.mxu0 0.0
        %989 = vmatprep.subr.mxu0 0.0
        %990 = vmatpush1.msra.mxu0 0.0
        %991 = vmatprep.subr.mxu0 0.0
        %992 = vmatpush1.msra.mxu0 0.0
        %993 = vmatprep.subr.mxu0 0.0
        %994 = vmatpush1.msra.mxu0 0.0
        %995 = vmatprep.subr.mxu0 0.0
        %996 = vmatpush1.msra.mxu0 0.0
        %997 = vmatprep.mubr.f32.mxu0 0.0
        %998 = vmatmul.mubr.f32.gmra.mrb[0].mxu0 %v578
        %v999 = vpop.f32.mrb[0].mxu0
        %v1000 = vadd.f32 %v929, %v999
        %v1001 = vpop.f32.mrb[0].mxu0
        %v1002 = vadd.f32 %v931, %v1001
        %1003 = vdwg.mxu0
        %v1004 = vld [vmem:[%s5] sm:$0xf]
        %1006 = vset.pattern.permute.xlu0 0
        %1007 = vperm.xlu0 %1006, %v1004
        %v1008 = vpop.permute.xlu0 %1007
        %v1010 = vadd.f32 %v858, %v1008
        %v1011 = vadd.f32 %v860, %v1008
        %v1012 = vadd.f32 %v1000, %v1008
        %v1013 = vadd.f32 %v1002, %v1008
        %v1014 = vlaneseq
        %v1015 = vand.u32 %v1014, 127
        %v1016 = vadd.s32 %v1015, 128
        %v1017 = vadd.s32 %v1015, 256
        %v1018 = vadd.s32 %v1015, 384
        %vm1019 = vcmp.lt.s32.totalorder %v1015, 0
        %v1020 = vsub.s32 0, %v1015
        %v1021 = vsel %vm1019, %v1020, %v1015
        %v1022 = vshrl.u32 %v1021, 8
        %v1023 = vand.u32 %v1021, 255
        %v1024 = vsub.s32 0, %v1023
        %v1025 = vsel %vm1019, %v1024, %v1023
        %vm1026 = vcmp.lt.s32.totalorder %v1016, 0
        %v1027 = vsub.s32 0, %v1016
        %v1028 = vsel %vm1026, %v1027, %v1016
        %v1029 = vshrl.u32 %v1028, 8
        %v1030 = vand.u32 %v1028, 255
        %v1031 = vsub.s32 0, %v1030
        %v1032 = vsel %vm1026, %v1031, %v1030
        %vm1033 = vcmp.lt.s32.totalorder %v1017, 0
        %v1034 = vsub.s32 0, %v1017
        %v1035 = vsel %vm1033, %v1034, %v1017
        %v1036 = vshrl.u32 %v1035, 8
        %v1037 = vand.u32 %v1035, 255
        %v1038 = vsub.s32 0, %v1037
        %v1039 = vsel %vm1033, %v1038, %v1037
        %vm1040 = vcmp.lt.s32.totalorder %v1018, 0
        %v1041 = vsub.s32 0, %v1018
        %v1042 = vsel %vm1040, %v1041, %v1018
        %v1043 = vshrl.u32 %v1042, 8
        %v1044 = vand.u32 %v1042, 255
        %v1045 = vsub.s32 0, %v1044
        %v1046 = vsel %vm1040, %v1045, %v1044
        %vm1047 = vcmp.ne.s32.totalorder %v1025, 0
        %vm1048 = vcmp.ne.s32.totalorder %v1032, 0
        %vm1049 = vcmp.ne.s32.totalorder %v1039, 0
        %vm1050 = vcmp.ne.s32.totalorder %v1046, 0
        %vm1051 = vcmp.lt.s32.totalorder %v1025, 0
        %vm1052 = vcmp.lt.s32.totalorder %v1032, 0
        %vm1053 = vcmp.lt.s32.totalorder %v1039, 0
        %vm1054 = vcmp.lt.s32.totalorder %v1046, 0
        %vm1055 = vmand %vm1051, %vm1047
        %vm1056 = vmand %vm1052, %vm1048
        %vm1057 = vmand %vm1053, %vm1049
        %vm1058 = vmand %vm1054, %vm1050
        %v1059 = vadd.s32 %v1025, 256
        %v1060 = vadd.s32 %v1032, 256
        %v1061 = vadd.s32 %v1039, 256
        %v1062 = vadd.s32 %v1046, 256
        %v1063 = vsel %vm1055, %v1059, %v1025
        %v1064 = vsel %vm1056, %v1060, %v1032
        %v1065 = vsel %vm1057, %v1061, %v1039
        %v1066 = vsel %vm1058, %v1062, %v1046
        %vm1067 = vcmp.ne.s32.totalorder %v1063, 0
        %vm1068 = vcmp.ne.s32.totalorder %v1064, 0
        %vm1069 = vcmp.ne.s32.totalorder %v1065, 0
        %vm1070 = vcmp.ne.s32.totalorder %v1066, 0
        %vm1071 = vcmp.ne.s32.totalorder %v1063, 255
        %vm1072 = vcmp.ne.s32.totalorder %v1064, 255
        %vm1073 = vcmp.ne.s32.totalorder %v1065, 255
        %vm1074 = vcmp.ne.s32.totalorder %v1066, 255
        %v1075 = vld [vmem:[%s6] sm:$0xf]
        %v1076 = vld [vmem:[%s6 + $0x4] sm:$0xf]
        %v1077 = vld [vmem:[%s6 + $0x8] sm:$0xf]
        %v1078 = vld [vmem:[%s7] sm:$0xf]
        %v1079 = vld [vmem:[%s7 + $0x4] sm:$0xf]
        %v1080 = vld [vmem:[%s7 + $0x8] sm:$0xf]
        %v1081 = vld [vmem:[%s8] sm:$0xf]
        %1082 = vrot.lane.b32.xlu0 %v1010, 1
        %v1083 = vpop.permute.xlu0 %1082
        %1084 = vrot.lane.b32.xlu0 %v1011, 1
        %v1085 = vpop.permute.xlu0 %1084
        %1086 = vrot.lane.b32.xlu0 %v1012, 1
        %v1087 = vpop.permute.xlu0 %1086
        %1088 = vrot.lane.b32.xlu0 %v1013, 1
        %v1089 = vpop.permute.xlu0 %1088
        %vm1090 = vcmp.lt.s32.totalorder %v1015, 1
        %v1091 = vsel %vm1090, %v1087, %v1089
        %v1092 = vsel %vm1090, %v1085, %v1087
        %v1093 = vsel %vm1090, %v1083, %v1085
        %v1094 = vsel %vm1090, %v1089, %v1083
        %v1095 = vsel %vm1067, 1, 0
        %v1096 = vsel %vm1068, 1, 0
        %v1097 = vsel %vm1069, 1, 0
        %v1098 = vsel %vm1070, 1, 0
        %vm1099 = vcmp.eq.s32.totalorder %v1095, 1
        %vm1100 = vcmp.eq.s32.totalorder %v1096, 1
        %vm1101 = vcmp.eq.s32.totalorder %v1097, 1
        %vm1102 = vcmp.eq.s32.totalorder %v1098, 1
        %v1103 = vsel %vm1099, %v1094, 0.0
        %v1104 = vsel %vm1100, %v1093, 0.0
        %v1105 = vsel %vm1101, %v1092, 0.0
        %v1106 = vsel %vm1102, %v1091, 0.0
        %1107 = vrot.lane.b32.xlu0 %v1010, 127
        %v1108 = vpop.permute.xlu0 %1107
        %1109 = vrot.lane.b32.xlu0 %v1011, 127
        %v1110 = vpop.permute.xlu0 %1109
        %1111 = vrot.lane.b32.xlu0 %v1012, 127
        %v1112 = vpop.permute.xlu0 %1111
        %1113 = vrot.lane.b32.xlu0 %v1013, 127
        %v1114 = vpop.permute.xlu0 %1113
        %vm1115 = vcmp.lt.s32.totalorder %v1015, 127
        %v1116 = vsel %vm1115, %v1112, %v1114
        %v1117 = vsel %vm1115, %v1110, %v1112
        %v1118 = vsel %vm1115, %v1108, %v1110
        %v1119 = vsel %vm1115, %v1114, %v1108
        %v1120 = vsel %vm1071, 1, 0
        %v1121 = vsel %vm1072, 1, 0
        %v1122 = vsel %vm1073, 1, 0
        %v1123 = vsel %vm1074, 1, 0
        %vm1124 = vcmp.eq.s32.totalorder %v1120, 1
        %vm1125 = vcmp.eq.s32.totalorder %v1121, 1
        %vm1126 = vcmp.eq.s32.totalorder %v1122, 1
        %vm1127 = vcmp.eq.s32.totalorder %v1123, 1
        %v1128 = vsel %vm1124, %v1118, 0.0
        %v1129 = vsel %vm1125, %v1117, 0.0
        %v1130 = vsel %vm1126, %v1116, 0.0
        %v1131 = vsel %vm1127, %v1119, 0.0
        %vm1132 = vcmask 31744
        %v1134 = vsel %vm1132, %v1075, 0
        %vm1136 = vcmask 1043456
        %v1138 = vsel %vm1136, %v1103, 0
        %v1141 = vsel %vm1136, %v1104, 0
        %v1144 = vsel %vm1136, %v1105, 0
        %v1147 = vsel %vm1136, %v1106, 0
        %1149 = vmatprep.subr.mxu0 %v1141
        %1150 = vmatpush1.msra.mxu0 %v1138
        %1151 = vmatprep.subr.mxu0 0.0
        %1152 = vmatpush1.msra.mxu0 0.0
        %1153 = vmatprep.subr.mxu0 0.0
        %1154 = vmatpush1.msra.mxu0 0.0
        %1155 = vmatprep.subr.mxu0 0.0
        %1156 = vmatpush1.msra.mxu0 0.0
        %1157 = vmatprep.subr.mxu0 0.0
        %1158 = vmatpush1.msra.mxu0 0.0
        %1159 = vmatprep.subr.mxu0 0.0
        %1160 = vmatpush1.msra.mxu0 0.0
        %1161 = vmatprep.subr.mxu0 0.0
        %1162 = vmatpush1.msra.mxu0 0.0
        %1163 = vmatprep.subr.mxu0 0.0
        %1164 = vmatpush1.msra.mxu0 0.0
        %1165 = vmatprep.subr.mxu0 0.0
        %1166 = vmatpush1.msra.mxu0 0.0
        %1167 = vmatprep.subr.mxu0 0.0
        %1168 = vmatpush1.msra.mxu0 0.0
        %1169 = vmatprep.subr.mxu0 0.0
        %1170 = vmatpush1.msra.mxu0 0.0
        %1171 = vmatprep.subr.mxu0 0.0
        %1172 = vmatpush1.msra.mxu0 0.0
        %1173 = vmatprep.subr.mxu0 0.0
        %1174 = vmatpush1.msra.mxu0 0.0
        %1175 = vmatprep.subr.mxu0 0.0
        %1176 = vmatpush1.msra.mxu0 0.0
        %1177 = vmatprep.subr.mxu0 0.0
        %1178 = vmatpush1.msra.mxu0 0.0
        %1179 = vmatprep.subr.mxu0 0.0
        %1180 = vmatpush1.msra.mxu0 0.0
        %1181 = vmatprep.subr.mxu0 0.0
        %1182 = vmatpush1.msra.mxu0 0.0
        %1183 = vmatprep.subr.mxu0 0.0
        %1184 = vmatpush1.msra.mxu0 0.0
        %1185 = vmatprep.subr.mxu0 0.0
        %1186 = vmatpush1.msra.mxu0 0.0
        %1187 = vmatprep.subr.mxu0 0.0
        %1188 = vmatpush1.msra.mxu0 0.0
        %1189 = vmatprep.subr.mxu0 0.0
        %1190 = vmatpush1.msra.mxu0 0.0
        %1191 = vmatprep.subr.mxu0 0.0
        %1192 = vmatpush1.msra.mxu0 0.0
        %1193 = vmatprep.subr.mxu0 0.0
        %1194 = vmatpush1.msra.mxu0 0.0
        %1195 = vmatprep.subr.mxu0 0.0
        %1196 = vmatpush1.msra.mxu0 0.0
        %1197 = vmatprep.subr.mxu0 0.0
        %1198 = vmatpush1.msra.mxu0 0.0
        %1199 = vmatprep.subr.mxu0 0.0
        %1200 = vmatpush1.msra.mxu0 0.0
        %1201 = vmatprep.subr.mxu0 0.0
        %1202 = vmatpush1.msra.mxu0 0.0
        %1203 = vmatprep.subr.mxu0 0.0
        %1204 = vmatpush1.msra.mxu0 0.0
        %1205 = vmatprep.subr.mxu0 0.0
        %1206 = vmatpush1.msra.mxu0 0.0
        %1207 = vmatprep.subr.mxu0 0.0
        %1208 = vmatpush1.msra.mxu0 0.0
        %1209 = vmatprep.subr.mxu0 0.0
        %1210 = vmatpush1.msra.mxu0 0.0
        %1211 = vmatprep.subr.mxu0 0.0
        %1212 = vmatpush1.msra.mxu0 0.0
        %1213 = vmatprep.mubr.f32.mxu0 0.0
        %1214 = vmatmul.mubr.f32.gmra.mrb[0].mxu0 %v1134
        %v1215 = vpop.f32.mrb[0].mxu0
        %v1216 = vadd.f32 0.0, %v1215
        %v1217 = vpop.f32.mrb[0].mxu0
        %v1218 = vadd.f32 0.0, %v1217
        %1219 = vdwg.mxu0
        %1220 = vmatprep.subr.mxu0 %v1147
        %1221 = vmatpush1.msra.mxu0 %v1144
        %1222 = vmatprep.subr.mxu0 0.0
        %1223 = vmatpush1.msra.mxu0 0.0
        %1224 = vmatprep.subr.mxu0 0.0
        %1225 = vmatpush1.msra.mxu0 0.0
        %1226 = vmatprep.subr.mxu0 0.0
        %1227 = vmatpush1.msra.mxu0 0.0
        %1228 = vmatprep.subr.mxu0 0.0
        %1229 = vmatpush1.msra.mxu0 0.0
        %1230 = vmatprep.subr.mxu0 0.0
        %1231 = vmatpush1.msra.mxu0 0.0
        %1232 = vmatprep.subr.mxu0 0.0
        %1233 = vmatpush1.msra.mxu0 0.0
        %1234 = vmatprep.subr.mxu0 0.0
        %1235 = vmatpush1.msra.mxu0 0.0
        %1236 = vmatprep.subr.mxu0 0.0
        %1237 = vmatpush1.msra.mxu0 0.0
        %1238 = vmatprep.subr.mxu0 0.0
        %1239 = vmatpush1.msra.mxu0 0.0
        %1240 = vmatprep.subr.mxu0 0.0
        %1241 = vmatpush1.msra.mxu0 0.0
        %1242 = vmatprep.subr.mxu0 0.0
        %1243 = vmatpush1.msra.mxu0 0.0
        %1244 = vmatprep.subr.mxu0 0.0
        %1245 = vmatpush1.msra.mxu0 0.0
        %1246 = vmatprep.subr.mxu0 0.0
        %1247 = vmatpush1.msra.mxu0 0.0
        %1248 = vmatprep.subr.mxu0 0.0
        %1249 = vmatpush1.msra.mxu0 0.0
        %1250 = vmatprep.subr.mxu0 0.0
        %1251 = vmatpush1.msra.mxu0 0.0
        %1252 = vmatprep.subr.mxu0 0.0
        %1253 = vmatpush1.msra.mxu0 0.0
        %1254 = vmatprep.subr.mxu0 0.0
        %1255 = vmatpush1.msra.mxu0 0.0
        %1256 = vmatprep.subr.mxu0 0.0
        %1257 = vmatpush1.msra.mxu0 0.0
        %1258 = vmatprep.subr.mxu0 0.0
        %1259 = vmatpush1.msra.mxu0 0.0
        %1260 = vmatprep.subr.mxu0 0.0
        %1261 = vmatpush1.msra.mxu0 0.0
        %1262 = vmatprep.subr.mxu0 0.0
        %1263 = vmatpush1.msra.mxu0 0.0
        %1264 = vmatprep.subr.mxu0 0.0
        %1265 = vmatpush1.msra.mxu0 0.0
        %1266 = vmatprep.subr.mxu0 0.0
        %1267 = vmatpush1.msra.mxu0 0.0
        %1268 = vmatprep.subr.mxu0 0.0
        %1269 = vmatpush1.msra.mxu0 0.0
        %1270 = vmatprep.subr.mxu0 0.0
        %1271 = vmatpush1.msra.mxu0 0.0
        %1272 = vmatprep.subr.mxu0 0.0
        %1273 = vmatpush1.msra.mxu0 0.0
        %1274 = vmatprep.subr.mxu0 0.0
        %1275 = vmatpush1.msra.mxu0 0.0
        %1276 = vmatprep.subr.mxu0 0.0
        %1277 = vmatpush1.msra.mxu0 0.0
        %1278 = vmatprep.subr.mxu0 0.0
        %1279 = vmatpush1.msra.mxu0 0.0
        %1280 = vmatprep.subr.mxu0 0.0
        %1281 = vmatpush1.msra.mxu0 0.0
        %1282 = vmatprep.subr.mxu0 0.0
        %1283 = vmatpush1.msra.mxu0 0.0
        %1284 = vmatprep.mubr.f32.mxu0 0.0
        %1285 = vmatmul.mubr.f32.gmra.mrb[0].mxu0 %v1134
        %v1286 = vpop.f32.mrb[0].mxu0
        %v1287 = vadd.f32 0.0, %v1286
        %v1288 = vpop.f32.mrb[0].mxu0
        %v1289 = vadd.f32 0.0, %v1288
        %1290 = vdwg.mxu0
        %v1292 = vsel %vm1132, %v1076, 0
        %v1295 = vsel %vm1136, %v1010, 0
        %v1298 = vsel %vm1136, %v1011, 0
        %v1301 = vsel %vm1136, %v1012, 0
        %v1304 = vsel %vm1136, %v1013, 0
        %1306 = vmatprep.subr.mxu0 %v1298
        %1307 = vmatpush1.msra.mxu0 %v1295
        %1308 = vmatprep.subr.mxu0 0.0
        %1309 = vmatpush1.msra.mxu0 0.0
        %1310 = vmatprep.subr.mxu0 0.0
        %1311 = vmatpush1.msra.mxu0 0.0
        %1312 = vmatprep.subr.mxu0 0.0
        %1313 = vmatpush1.msra.mxu0 0.0
        %1314 = vmatprep.subr.mxu0 0.0
        %1315 = vmatpush1.msra.mxu0 0.0
        %1316 = vmatprep.subr.mxu0 0.0
        %1317 = vmatpush1.msra.mxu0 0.0
        %1318 = vmatprep.subr.mxu0 0.0
        %1319 = vmatpush1.msra.mxu0 0.0
        %1320 = vmatprep.subr.mxu0 0.0
        %1321 = vmatpush1.msra.mxu0 0.0
        %1322 = vmatprep.subr.mxu0 0.0
        %1323 = vmatpush1.msra.mxu0 0.0
        %1324 = vmatprep.subr.mxu0 0.0
        %1325 = vmatpush1.msra.mxu0 0.0
        %1326 = vmatprep.subr.mxu0 0.0
        %1327 = vmatpush1.msra.mxu0 0.0
        %1328 = vmatprep.subr.mxu0 0.0
        %1329 = vmatpush1.msra.mxu0 0.0
        %1330 = vmatprep.subr.mxu0 0.0
        %1331 = vmatpush1.msra.mxu0 0.0
        %1332 = vmatprep.subr.mxu0 0.0
        %1333 = vmatpush1.msra.mxu0 0.0
        %1334 = vmatprep.subr.mxu0 0.0
        %1335 = vmatpush1.msra.mxu0 0.0
        %1336 = vmatprep.subr.mxu0 0.0
        %1337 = vmatpush1.msra.mxu0 0.0
        %1338 = vmatprep.subr.mxu0 0.0
        %1339 = vmatpush1.msra.mxu0 0.0
        %1340 = vmatprep.subr.mxu0 0.0
        %1341 = vmatpush1.msra.mxu0 0.0
        %1342 = vmatprep.subr.mxu0 0.0
        %1343 = vmatpush1.msra.mxu0 0.0
        %1344 = vmatprep.subr.mxu0 0.0
        %1345 = vmatpush1.msra.mxu0 0.0
        %1346 = vmatprep.subr.mxu0 0.0
        %1347 = vmatpush1.msra.mxu0 0.0
        %1348 = vmatprep.subr.mxu0 0.0
        %1349 = vmatpush1.msra.mxu0 0.0
        %1350 = vmatprep.subr.mxu0 0.0
        %1351 = vmatpush1.msra.mxu0 0.0
        %1352 = vmatprep.subr.mxu0 0.0
        %1353 = vmatpush1.msra.mxu0 0.0
        %1354 = vmatprep.subr.mxu0 0.0
        %1355 = vmatpush1.msra.mxu0 0.0
        %1356 = vmatprep.subr.mxu0 0.0
        %1357 = vmatpush1.msra.mxu0 0.0
        %1358 = vmatprep.subr.mxu0 0.0
        %1359 = vmatpush1.msra.mxu0 0.0
        %1360 = vmatprep.subr.mxu0 0.0
        %1361 = vmatpush1.msra.mxu0 0.0
        %1362 = vmatprep.subr.mxu0 0.0
        %1363 = vmatpush1.msra.mxu0 0.0
        %1364 = vmatprep.subr.mxu0 0.0
        %1365 = vmatpush1.msra.mxu0 0.0
        %1366 = vmatprep.subr.mxu0 0.0
        %1367 = vmatpush1.msra.mxu0 0.0
        %1368 = vmatprep.subr.mxu0 0.0
        %1369 = vmatpush1.msra.mxu0 0.0
        %1370 = vmatprep.mubr.f32.mxu0 0.0
        %1371 = vmatmul.mubr.f32.gmra.mrb[0].mxu0 %v1292
        %v1372 = vpop.f32.mrb[0].mxu0
        %v1373 = vadd.f32 %v1216, %v1372
        %v1374 = vpop.f32.mrb[0].mxu0
        %v1375 = vadd.f32 %v1218, %v1374
        %1376 = vdwg.mxu0
        %1377 = vmatprep.subr.mxu0 %v1304
        %1378 = vmatpush1.msra.mxu0 %v1301
        %1379 = vmatprep.subr.mxu0 0.0
        %1380 = vmatpush1.msra.mxu0 0.0
        %1381 = vmatprep.subr.mxu0 0.0
        %1382 = vmatpush1.msra.mxu0 0.0
        %1383 = vmatprep.subr.mxu0 0.0
        %1384 = vmatpush1.msra.mxu0 0.0
        %1385 = vmatprep.subr.mxu0 0.0
        %1386 = vmatpush1.msra.mxu0 0.0
        %1387 = vmatprep.subr.mxu0 0.0
        %1388 = vmatpush1.msra.mxu0 0.0
        %1389 = vmatprep.subr.mxu0 0.0
        %1390 = vmatpush1.msra.mxu0 0.0
        %1391 = vmatprep.subr.mxu0 0.0
        %1392 = vmatpush1.msra.mxu0 0.0
        %1393 = vmatprep.subr.mxu0 0.0
        %1394 = vmatpush1.msra.mxu0 0.0
        %1395 = vmatprep.subr.mxu0 0.0
        %1396 = vmatpush1.msra.mxu0 0.0
        %1397 = vmatprep.subr.mxu0 0.0
        %1398 = vmatpush1.msra.mxu0 0.0
        %1399 = vmatprep.subr.mxu0 0.0
        %1400 = vmatpush1.msra.mxu0 0.0
        %1401 = vmatprep.subr.mxu0 0.0
        %1402 = vmatpush1.msra.mxu0 0.0
        %1403 = vmatprep.subr.mxu0 0.0
        %1404 = vmatpush1.msra.mxu0 0.0
        %1405 = vmatprep.subr.mxu0 0.0
        %1406 = vmatpush1.msra.mxu0 0.0
        %1407 = vmatprep.subr.mxu0 0.0
        %1408 = vmatpush1.msra.mxu0 0.0
        %1409 = vmatprep.subr.mxu0 0.0
        %1410 = vmatpush1.msra.mxu0 0.0
        %1411 = vmatprep.subr.mxu0 0.0
        %1412 = vmatpush1.msra.mxu0 0.0
        %1413 = vmatprep.subr.mxu0 0.0
        %1414 = vmatpush1.msra.mxu0 0.0
        %1415 = vmatprep.subr.mxu0 0.0
        %1416 = vmatpush1.msra.mxu0 0.0
        %1417 = vmatprep.subr.mxu0 0.0
        %1418 = vmatpush1.msra.mxu0 0.0
        %1419 = vmatprep.subr.mxu0 0.0
        %1420 = vmatpush1.msra.mxu0 0.0
        %1421 = vmatprep.subr.mxu0 0.0
        %1422 = vmatpush1.msra.mxu0 0.0
        %1423 = vmatprep.subr.mxu0 0.0
        %1424 = vmatpush1.msra.mxu0 0.0
        %1425 = vmatprep.subr.mxu0 0.0
        %1426 = vmatpush1.msra.mxu0 0.0
        %1427 = vmatprep.subr.mxu0 0.0
        %1428 = vmatpush1.msra.mxu0 0.0
        %1429 = vmatprep.subr.mxu0 0.0
        %1430 = vmatpush1.msra.mxu0 0.0
        %1431 = vmatprep.subr.mxu0 0.0
        %1432 = vmatpush1.msra.mxu0 0.0
        %1433 = vmatprep.subr.mxu0 0.0
        %1434 = vmatpush1.msra.mxu0 0.0
        %1435 = vmatprep.subr.mxu0 0.0
        %1436 = vmatpush1.msra.mxu0 0.0
        %1437 = vmatprep.subr.mxu0 0.0
        %1438 = vmatpush1.msra.mxu0 0.0
        %1439 = vmatprep.subr.mxu0 0.0
        %1440 = vmatpush1.msra.mxu0 0.0
        %1441 = vmatprep.mubr.f32.mxu0 0.0
        %1442 = vmatmul.mubr.f32.gmra.mrb[0].mxu0 %v1292
        %v1443 = vpop.f32.mrb[0].mxu0
        %v1444 = vadd.f32 %v1287, %v1443
        %v1445 = vpop.f32.mrb[0].mxu0
        %v1446 = vadd.f32 %v1289, %v1445
        %1447 = vdwg.mxu0
        %v1449 = vsel %vm1132, %v1077, 0
        %v1452 = vsel %vm1136, %v1128, 0
        %v1455 = vsel %vm1136, %v1129, 0
        %v1458 = vsel %vm1136, %v1130, 0
        %v1461 = vsel %vm1136, %v1131, 0
        %1463 = vmatprep.subr.mxu0 %v1455
        %1464 = vmatpush1.msra.mxu0 %v1452
        %1465 = vmatprep.subr.mxu0 0.0
        %1466 = vmatpush1.msra.mxu0 0.0
        %1467 = vmatprep.subr.mxu0 0.0
        %1468 = vmatpush1.msra.mxu0 0.0
        %1469 = vmatprep.subr.mxu0 0.0
        %1470 = vmatpush1.msra.mxu0 0.0
        %1471 = vmatprep.subr.mxu0 0.0
        %1472 = vmatpush1.msra.mxu0 0.0
        %1473 = vmatprep.subr.mxu0 0.0
        %1474 = vmatpush1.msra.mxu0 0.0
        %1475 = vmatprep.subr.mxu0 0.0
        %1476 = vmatpush1.msra.mxu0 0.0
        %1477 = vmatprep.subr.mxu0 0.0
        %1478 = vmatpush1.msra.mxu0 0.0
        %1479 = vmatprep.subr.mxu0 0.0
        %1480 = vmatpush1.msra.mxu0 0.0
        %1481 = vmatprep.subr.mxu0 0.0
        %1482 = vmatpush1.msra.mxu0 0.0
        %1483 = vmatprep.subr.mxu0 0.0
        %1484 = vmatpush1.msra.mxu0 0.0
        %1485 = vmatprep.subr.mxu0 0.0
        %1486 = vmatpush1.msra.mxu0 0.0
        %1487 = vmatprep.subr.mxu0 0.0
        %1488 = vmatpush1.msra.mxu0 0.0
        %1489 = vmatprep.subr.mxu0 0.0
        %1490 = vmatpush1.msra.mxu0 0.0
        %1491 = vmatprep.subr.mxu0 0.0
        %1492 = vmatpush1.msra.mxu0 0.0
        %1493 = vmatprep.subr.mxu0 0.0
        %1494 = vmatpush1.msra.mxu0 0.0
        %1495 = vmatprep.subr.mxu0 0.0
        %1496 = vmatpush1.msra.mxu0 0.0
        %1497 = vmatprep.subr.mxu0 0.0
        %1498 = vmatpush1.msra.mxu0 0.0
        %1499 = vmatprep.subr.mxu0 0.0
        %1500 = vmatpush1.msra.mxu0 0.0
        %1501 = vmatprep.subr.mxu0 0.0
        %1502 = vmatpush1.msra.mxu0 0.0
        %1503 = vmatprep.subr.mxu0 0.0
        %1504 = vmatpush1.msra.mxu0 0.0
        %1505 = vmatprep.subr.mxu0 0.0
        %1506 = vmatpush1.msra.mxu0 0.0
        %1507 = vmatprep.subr.mxu0 0.0
        %1508 = vmatpush1.msra.mxu0 0.0
        %1509 = vmatprep.subr.mxu0 0.0
        %1510 = vmatpush1.msra.mxu0 0.0
        %1511 = vmatprep.subr.mxu0 0.0
        %1512 = vmatpush1.msra.mxu0 0.0
        %1513 = vmatprep.subr.mxu0 0.0
        %1514 = vmatpush1.msra.mxu0 0.0
        %1515 = vmatprep.subr.mxu0 0.0
        %1516 = vmatpush1.msra.mxu0 0.0
        %1517 = vmatprep.subr.mxu0 0.0
        %1518 = vmatpush1.msra.mxu0 0.0
        %1519 = vmatprep.subr.mxu0 0.0
        %1520 = vmatpush1.msra.mxu0 0.0
        %1521 = vmatprep.subr.mxu0 0.0
        %1522 = vmatpush1.msra.mxu0 0.0
        %1523 = vmatprep.subr.mxu0 0.0
        %1524 = vmatpush1.msra.mxu0 0.0
        %1525 = vmatprep.subr.mxu0 0.0
        %1526 = vmatpush1.msra.mxu0 0.0
        %1527 = vmatprep.mubr.f32.mxu0 0.0
        %1528 = vmatmul.mubr.f32.gmra.mrb[0].mxu0 %v1449
        %v1529 = vpop.f32.mrb[0].mxu0
        %v1530 = vadd.f32 0.0, %v1529
        %v1531 = vpop.f32.mrb[0].mxu0
        %v1532 = vadd.f32 0.0, %v1531
        %1533 = vdwg.mxu0
        %1534 = vmatprep.subr.mxu0 %v1461
        %1535 = vmatpush1.msra.mxu0 %v1458
        %1536 = vmatprep.subr.mxu0 0.0
        %1537 = vmatpush1.msra.mxu0 0.0
        %1538 = vmatprep.subr.mxu0 0.0
        %1539 = vmatpush1.msra.mxu0 0.0
        %1540 = vmatprep.subr.mxu0 0.0
        %1541 = vmatpush1.msra.mxu0 0.0
        %1542 = vmatprep.subr.mxu0 0.0
        %1543 = vmatpush1.msra.mxu0 0.0
        %1544 = vmatprep.subr.mxu0 0.0
        %1545 = vmatpush1.msra.mxu0 0.0
        %1546 = vmatprep.subr.mxu0 0.0
        %1547 = vmatpush1.msra.mxu0 0.0
        %1548 = vmatprep.subr.mxu0 0.0
        %1549 = vmatpush1.msra.mxu0 0.0
        %1550 = vmatprep.subr.mxu0 0.0
        %1551 = vmatpush1.msra.mxu0 0.0
        %1552 = vmatprep.subr.mxu0 0.0
        %1553 = vmatpush1.msra.mxu0 0.0
        %1554 = vmatprep.subr.mxu0 0.0
        %1555 = vmatpush1.msra.mxu0 0.0
        %1556 = vmatprep.subr.mxu0 0.0
        %1557 = vmatpush1.msra.mxu0 0.0
        %1558 = vmatprep.subr.mxu0 0.0
        %1559 = vmatpush1.msra.mxu0 0.0
        %1560 = vmatprep.subr.mxu0 0.0
        %1561 = vmatpush1.msra.mxu0 0.0
        %1562 = vmatprep.subr.mxu0 0.0
        %1563 = vmatpush1.msra.mxu0 0.0
        %1564 = vmatprep.subr.mxu0 0.0
        %1565 = vmatpush1.msra.mxu0 0.0
        %1566 = vmatprep.subr.mxu0 0.0
        %1567 = vmatpush1.msra.mxu0 0.0
        %1568 = vmatprep.subr.mxu0 0.0
        %1569 = vmatpush1.msra.mxu0 0.0
        %1570 = vmatprep.subr.mxu0 0.0
        %1571 = vmatpush1.msra.mxu0 0.0
        %1572 = vmatprep.subr.mxu0 0.0
        %1573 = vmatpush1.msra.mxu0 0.0
        %1574 = vmatprep.subr.mxu0 0.0
        %1575 = vmatpush1.msra.mxu0 0.0
        %1576 = vmatprep.subr.mxu0 0.0
        %1577 = vmatpush1.msra.mxu0 0.0
        %1578 = vmatprep.subr.mxu0 0.0
        %1579 = vmatpush1.msra.mxu0 0.0
        %1580 = vmatprep.subr.mxu0 0.0
        %1581 = vmatpush1.msra.mxu0 0.0
        %1582 = vmatprep.subr.mxu0 0.0
        %1583 = vmatpush1.msra.mxu0 0.0
        %1584 = vmatprep.subr.mxu0 0.0
        %1585 = vmatpush1.msra.mxu0 0.0
        %1586 = vmatprep.subr.mxu0 0.0
        %1587 = vmatpush1.msra.mxu0 0.0
        %1588 = vmatprep.subr.mxu0 0.0
        %1589 = vmatpush1.msra.mxu0 0.0
        %1590 = vmatprep.subr.mxu0 0.0
        %1591 = vmatpush1.msra.mxu0 0.0
        %1592 = vmatprep.subr.mxu0 0.0
        %1593 = vmatpush1.msra.mxu0 0.0
        %1594 = vmatprep.subr.mxu0 0.0
        %1595 = vmatpush1.msra.mxu0 0.0
        %1596 = vmatprep.subr.mxu0 0.0
        %1597 = vmatpush1.msra.mxu0 0.0
        %1598 = vmatprep.mubr.f32.mxu0 0.0
        %1599 = vmatmul.mubr.f32.gmra.mrb[0].mxu0 %v1449
        %v1600 = vpop.f32.mrb[0].mxu0
        %v1601 = vadd.f32 0.0, %v1600
        %v1602 = vpop.f32.mrb[0].mxu0
        %v1603 = vadd.f32 0.0, %v1602
        %1604 = vdwg.mxu0
        %v1605 = vadd.f32 %v1373, %v1530
        %v1606 = vadd.f32 %v1375, %v1532
        %v1607 = vadd.f32 %v1444, %v1601
        %v1608 = vadd.f32 %v1446, %v1603
        %1609 = vrot.lane.b32.xlu0 %v495, 1
        %v1610 = vpop.permute.xlu0 %1609
        %1611 = vrot.lane.b32.xlu0 %v499, 1
        %v1612 = vpop.permute.xlu0 %1611
        %1613 = vrot.lane.b32.xlu0 %v497, 1
        %v1614 = vpop.permute.xlu0 %1613
        %1615 = vrot.lane.b32.xlu0 %v502, 1
        %v1616 = vpop.permute.xlu0 %1615
        %v1617 = vsel %vm1090, %v1614, %v1616
        %v1618 = vsel %vm1090, %v1612, %v1614
        %v1619 = vsel %vm1090, %v1610, %v1612
        %v1620 = vsel %vm1090, %v1616, %v1610
        %v1621 = vsel %vm1099, %v1620, 0.0
        %v1622 = vsel %vm1100, %v1619, 0.0
        %v1623 = vsel %vm1101, %v1618, 0.0
        %v1624 = vsel %vm1102, %v1617, 0.0
        %1625 = vrot.lane.b32.xlu0 %v495, 127
        %v1626 = vpop.permute.xlu0 %1625
        %1627 = vrot.lane.b32.xlu0 %v499, 127
        %v1628 = vpop.permute.xlu0 %1627
        %1629 = vrot.lane.b32.xlu0 %v497, 127
        %v1630 = vpop.permute.xlu0 %1629
        %1631 = vrot.lane.b32.xlu0 %v502, 127
        %v1632 = vpop.permute.xlu0 %1631
        %v1633 = vsel %vm1115, %v1630, %v1632
        %v1634 = vsel %vm1115, %v1628, %v1630
        %v1635 = vsel %vm1115, %v1626, %v1628
        %v1636 = vsel %vm1115, %v1632, %v1626
        %v1637 = vsel %vm1124, %v1635, 0.0
        %v1638 = vsel %vm1125, %v1634, 0.0
        %v1639 = vsel %vm1126, %v1633, 0.0
        %v1640 = vsel %vm1127, %v1636, 0.0
        %v1642 = vsel %vm1132, %v1078, 0
        %v1645 = vsel %vm1136, %v1621, 0
        %v1648 = vsel %vm1136, %v1622, 0
        %v1651 = vsel %vm1136, %v1623, 0
        %v1654 = vsel %vm1136, %v1624, 0
        %1656 = vmatprep.subr.mxu0 %v1648
        %1657 = vmatpush1.msra.mxu0 %v1645
        %1658 = vmatprep.subr.mxu0 0.0
        %1659 = vmatpush1.msra.mxu0 0.0
        %1660 = vmatprep.subr.mxu0 0.0
        %1661 = vmatpush1.msra.mxu0 0.0
        %1662 = vmatprep.subr.mxu0 0.0
        %1663 = vmatpush1.msra.mxu0 0.0
        %1664 = vmatprep.subr.mxu0 0.0
        %1665 = vmatpush1.msra.mxu0 0.0
        %1666 = vmatprep.subr.mxu0 0.0
        %1667 = vmatpush1.msra.mxu0 0.0
        %1668 = vmatprep.subr.mxu0 0.0
        %1669 = vmatpush1.msra.mxu0 0.0
        %1670 = vmatprep.subr.mxu0 0.0
        %1671 = vmatpush1.msra.mxu0 0.0
        %1672 = vmatprep.subr.mxu0 0.0
        %1673 = vmatpush1.msra.mxu0 0.0
        %1674 = vmatprep.subr.mxu0 0.0
        %1675 = vmatpush1.msra.mxu0 0.0
        %1676 = vmatprep.subr.mxu0 0.0
        %1677 = vmatpush1.msra.mxu0 0.0
        %1678 = vmatprep.subr.mxu0 0.0
        %1679 = vmatpush1.msra.mxu0 0.0
        %1680 = vmatprep.subr.mxu0 0.0
        %1681 = vmatpush1.msra.mxu0 0.0
        %1682 = vmatprep.subr.mxu0 0.0
        %1683 = vmatpush1.msra.mxu0 0.0
        %1684 = vmatprep.subr.mxu0 0.0
        %1685 = vmatpush1.msra.mxu0 0.0
        %1686 = vmatprep.subr.mxu0 0.0
        %1687 = vmatpush1.msra.mxu0 0.0
        %1688 = vmatprep.subr.mxu0 0.0
        %1689 = vmatpush1.msra.mxu0 0.0
        %1690 = vmatprep.subr.mxu0 0.0
        %1691 = vmatpush1.msra.mxu0 0.0
        %1692 = vmatprep.subr.mxu0 0.0
        %1693 = vmatpush1.msra.mxu0 0.0
        %1694 = vmatprep.subr.mxu0 0.0
        %1695 = vmatpush1.msra.mxu0 0.0
        %1696 = vmatprep.subr.mxu0 0.0
        %1697 = vmatpush1.msra.mxu0 0.0
        %1698 = vmatprep.subr.mxu0 0.0
        %1699 = vmatpush1.msra.mxu0 0.0
        %1700 = vmatprep.subr.mxu0 0.0
        %1701 = vmatpush1.msra.mxu0 0.0
        %1702 = vmatprep.subr.mxu0 0.0
        %1703 = vmatpush1.msra.mxu0 0.0
        %1704 = vmatprep.subr.mxu0 0.0
        %1705 = vmatpush1.msra.mxu0 0.0
        %1706 = vmatprep.subr.mxu0 0.0
        %1707 = vmatpush1.msra.mxu0 0.0
        %1708 = vmatprep.subr.mxu0 0.0
        %1709 = vmatpush1.msra.mxu0 0.0
        %1710 = vmatprep.subr.mxu0 0.0
        %1711 = vmatpush1.msra.mxu0 0.0
        %1712 = vmatprep.subr.mxu0 0.0
        %1713 = vmatpush1.msra.mxu0 0.0
        %1714 = vmatprep.subr.mxu0 0.0
        %1715 = vmatpush1.msra.mxu0 0.0
        %1716 = vmatprep.subr.mxu0 0.0
        %1717 = vmatpush1.msra.mxu0 0.0
        %1718 = vmatprep.subr.mxu0 0.0
        %1719 = vmatpush1.msra.mxu0 0.0
        %1720 = vmatprep.mubr.f32.mxu0 0.0
        %1721 = vmatmul.mubr.f32.gmra.mrb[0].mxu0 %v1642
        %v1722 = vpop.f32.mrb[0].mxu0
        %v1723 = vadd.f32 0.0, %v1722
        %v1724 = vpop.f32.mrb[0].mxu0
        %v1725 = vadd.f32 0.0, %v1724
        %1726 = vdwg.mxu0
        %1727 = vmatprep.subr.mxu0 %v1654
        %1728 = vmatpush1.msra.mxu0 %v1651
        %1729 = vmatprep.subr.mxu0 0.0
        %1730 = vmatpush1.msra.mxu0 0.0
        %1731 = vmatprep.subr.mxu0 0.0
        %1732 = vmatpush1.msra.mxu0 0.0
        %1733 = vmatprep.subr.mxu0 0.0
        %1734 = vmatpush1.msra.mxu0 0.0
        %1735 = vmatprep.subr.mxu0 0.0
        %1736 = vmatpush1.msra.mxu0 0.0
        %1737 = vmatprep.subr.mxu0 0.0
        %1738 = vmatpush1.msra.mxu0 0.0
        %1739 = vmatprep.subr.mxu0 0.0
        %1740 = vmatpush1.msra.mxu0 0.0
        %1741 = vmatprep.subr.mxu0 0.0
        %1742 = vmatpush1.msra.mxu0 0.0
        %1743 = vmatprep.subr.mxu0 0.0
        %1744 = vmatpush1.msra.mxu0 0.0
        %1745 = vmatprep.subr.mxu0 0.0
        %1746 = vmatpush1.msra.mxu0 0.0
        %1747 = vmatprep.subr.mxu0 0.0
        %1748 = vmatpush1.msra.mxu0 0.0
        %1749 = vmatprep.subr.mxu0 0.0
        %1750 = vmatpush1.msra.mxu0 0.0
        %1751 = vmatprep.subr.mxu0 0.0
        %1752 = vmatpush1.msra.mxu0 0.0
        %1753 = vmatprep.subr.mxu0 0.0
        %1754 = vmatpush1.msra.mxu0 0.0
        %1755 = vmatprep.subr.mxu0 0.0
        %1756 = vmatpush1.msra.mxu0 0.0
        %1757 = vmatprep.subr.mxu0 0.0
        %1758 = vmatpush1.msra.mxu0 0.0
        %1759 = vmatprep.subr.mxu0 0.0
        %1760 = vmatpush1.msra.mxu0 0.0
        %1761 = vmatprep.subr.mxu0 0.0
        %1762 = vmatpush1.msra.mxu0 0.0
        %1763 = vmatprep.subr.mxu0 0.0
        %1764 = vmatpush1.msra.mxu0 0.0
        %1765 = vmatprep.subr.mxu0 0.0
        %1766 = vmatpush1.msra.mxu0 0.0
        %1767 = vmatprep.subr.mxu0 0.0
        %1768 = vmatpush1.msra.mxu0 0.0
        %1769 = vmatprep.subr.mxu0 0.0
        %1770 = vmatpush1.msra.mxu0 0.0
        %1771 = vmatprep.subr.mxu0 0.0
        %1772 = vmatpush1.msra.mxu0 0.0
        %1773 = vmatprep.subr.mxu0 0.0
        %1774 = vmatpush1.msra.mxu0 0.0
        %1775 = vmatprep.subr.mxu0 0.0
        %1776 = vmatpush1.msra.mxu0 0.0
        %1777 = vmatprep.subr.mxu0 0.0
        %1778 = vmatpush1.msra.mxu0 0.0
        %1779 = vmatprep.subr.mxu0 0.0
        %1780 = vmatpush1.msra.mxu0 0.0
        %1781 = vmatprep.subr.mxu0 0.0
        %1782 = vmatpush1.msra.mxu0 0.0
        %1783 = vmatprep.subr.mxu0 0.0
        %1784 = vmatpush1.msra.mxu0 0.0
        %1785 = vmatprep.subr.mxu0 0.0
        %1786 = vmatpush1.msra.mxu0 0.0
        %1787 = vmatprep.subr.mxu0 0.0
        %1788 = vmatpush1.msra.mxu0 0.0
        %1789 = vmatprep.subr.mxu0 0.0
        %1790 = vmatpush1.msra.mxu0 0.0
        %1791 = vmatprep.mubr.f32.mxu0 0.0
        %1792 = vmatmul.mubr.f32.gmra.mrb[0].mxu0 %v1642
        %v1793 = vpop.f32.mrb[0].mxu0
        %v1794 = vadd.f32 0.0, %v1793
        %v1795 = vpop.f32.mrb[0].mxu0
        %v1796 = vadd.f32 0.0, %v1795
        %1797 = vdwg.mxu0
        %v1799 = vsel %vm1132, %v1079, 0
        %v1801 = vsel %vm1136, %v495, 0
        %v1803 = vsel %vm1136, %v499, 0
        %v1805 = vsel %vm1136, %v497, 0
        %v1807 = vsel %vm1136, %v502, 0
        %1809 = vmatprep.subr.mxu0 %v1803
        %1810 = vmatpush1.msra.mxu0 %v1801
        %1811 = vmatprep.subr.mxu0 0.0
        %1812 = vmatpush1.msra.mxu0 0.0
        %1813 = vmatprep.subr.mxu0 0.0
        %1814 = vmatpush1.msra.mxu0 0.0
        %1815 = vmatprep.subr.mxu0 0.0
        %1816 = vmatpush1.msra.mxu0 0.0
        %1817 = vmatprep.subr.mxu0 0.0
        %1818 = vmatpush1.msra.mxu0 0.0
        %1819 = vmatprep.subr.mxu0 0.0
        %1820 = vmatpush1.msra.mxu0 0.0
        %1821 = vmatprep.subr.mxu0 0.0
        %1822 = vmatpush1.msra.mxu0 0.0
        %1823 = vmatprep.subr.mxu0 0.0
        %1824 = vmatpush1.msra.mxu0 0.0
        %1825 = vmatprep.subr.mxu0 0.0
        %1826 = vmatpush1.msra.mxu0 0.0
        %1827 = vmatprep.subr.mxu0 0.0
        %1828 = vmatpush1.msra.mxu0 0.0
        %1829 = vmatprep.subr.mxu0 0.0
        %1830 = vmatpush1.msra.mxu0 0.0
        %1831 = vmatprep.subr.mxu0 0.0
        %1832 = vmatpush1.msra.mxu0 0.0
        %1833 = vmatprep.subr.mxu0 0.0
        %1834 = vmatpush1.msra.mxu0 0.0
        %1835 = vmatprep.subr.mxu0 0.0
        %1836 = vmatpush1.msra.mxu0 0.0
        %1837 = vmatprep.subr.mxu0 0.0
        %1838 = vmatpush1.msra.mxu0 0.0
        %1839 = vmatprep.subr.mxu0 0.0
        %1840 = vmatpush1.msra.mxu0 0.0
        %1841 = vmatprep.subr.mxu0 0.0
        %1842 = vmatpush1.msra.mxu0 0.0
        %1843 = vmatprep.subr.mxu0 0.0
        %1844 = vmatpush1.msra.mxu0 0.0
        %1845 = vmatprep.subr.mxu0 0.0
        %1846 = vmatpush1.msra.mxu0 0.0
        %1847 = vmatprep.subr.mxu0 0.0
        %1848 = vmatpush1.msra.mxu0 0.0
        %1849 = vmatprep.subr.mxu0 0.0
        %1850 = vmatpush1.msra.mxu0 0.0
        %1851 = vmatprep.subr.mxu0 0.0
        %1852 = vmatpush1.msra.mxu0 0.0
        %1853 = vmatprep.subr.mxu0 0.0
        %1854 = vmatpush1.msra.mxu0 0.0
        %1855 = vmatprep.subr.mxu0 0.0
        %1856 = vmatpush1.msra.mxu0 0.0
        %1857 = vmatprep.subr.mxu0 0.0
        %1858 = vmatpush1.msra.mxu0 0.0
        %1859 = vmatprep.subr.mxu0 0.0
        %1860 = vmatpush1.msra.mxu0 0.0
        %1861 = vmatprep.subr.mxu0 0.0
        %1862 = vmatpush1.msra.mxu0 0.0
        %1863 = vmatprep.subr.mxu0 0.0
        %1864 = vmatpush1.msra.mxu0 0.0
        %1865 = vmatprep.subr.mxu0 0.0
        %1866 = vmatpush1.msra.mxu0 0.0
        %1867 = vmatprep.subr.mxu0 0.0
        %1868 = vmatpush1.msra.mxu0 0.0
        %1869 = vmatprep.subr.mxu0 0.0
        %1870 = vmatpush1.msra.mxu0 0.0
        %1871 = vmatprep.subr.mxu0 0.0
        %1872 = vmatpush1.msra.mxu0 0.0
        %1873 = vmatprep.mubr.f32.mxu0 0.0
        %1874 = vmatmul.mubr.f32.gmra.mrb[0].mxu0 %v1799
        %v1875 = vpop.f32.mrb[0].mxu0
        %v1876 = vadd.f32 %v1723, %v1875
        %v1877 = vpop.f32.mrb[0].mxu0
        %v1878 = vadd.f32 %v1725, %v1877
        %1879 = vdwg.mxu0
        %1880 = vmatprep.subr.mxu0 %v1807
        %1881 = vmatpush1.msra.mxu0 %v1805
        %1882 = vmatprep.subr.mxu0 0.0
        %1883 = vmatpush1.msra.mxu0 0.0
        %1884 = vmatprep.subr.mxu0 0.0
        %1885 = vmatpush1.msra.mxu0 0.0
        %1886 = vmatprep.subr.mxu0 0.0
        %1887 = vmatpush1.msra.mxu0 0.0
        %1888 = vmatprep.subr.mxu0 0.0
        %1889 = vmatpush1.msra.mxu0 0.0
        %1890 = vmatprep.subr.mxu0 0.0
        %1891 = vmatpush1.msra.mxu0 0.0
        %1892 = vmatprep.subr.mxu0 0.0
        %1893 = vmatpush1.msra.mxu0 0.0
        %1894 = vmatprep.subr.mxu0 0.0
        %1895 = vmatpush1.msra.mxu0 0.0
        %1896 = vmatprep.subr.mxu0 0.0
        %1897 = vmatpush1.msra.mxu0 0.0
        %1898 = vmatprep.subr.mxu0 0.0
        %1899 = vmatpush1.msra.mxu0 0.0
        %1900 = vmatprep.subr.mxu0 0.0
        %1901 = vmatpush1.msra.mxu0 0.0
        %1902 = vmatprep.subr.mxu0 0.0
        %1903 = vmatpush1.msra.mxu0 0.0
        %1904 = vmatprep.subr.mxu0 0.0
        %1905 = vmatpush1.msra.mxu0 0.0
        %1906 = vmatprep.subr.mxu0 0.0
        %1907 = vmatpush1.msra.mxu0 0.0
        %1908 = vmatprep.subr.mxu0 0.0
        %1909 = vmatpush1.msra.mxu0 0.0
        %1910 = vmatprep.subr.mxu0 0.0
        %1911 = vmatpush1.msra.mxu0 0.0
        %1912 = vmatprep.subr.mxu0 0.0
        %1913 = vmatpush1.msra.mxu0 0.0
        %1914 = vmatprep.subr.mxu0 0.0
        %1915 = vmatpush1.msra.mxu0 0.0
        %1916 = vmatprep.subr.mxu0 0.0
        %1917 = vmatpush1.msra.mxu0 0.0
        %1918 = vmatprep.subr.mxu0 0.0
        %1919 = vmatpush1.msra.mxu0 0.0
        %1920 = vmatprep.subr.mxu0 0.0
        %1921 = vmatpush1.msra.mxu0 0.0
        %1922 = vmatprep.subr.mxu0 0.0
        %1923 = vmatpush1.msra.mxu0 0.0
        %1924 = vmatprep.subr.mxu0 0.0
        %1925 = vmatpush1.msra.mxu0 0.0
        %1926 = vmatprep.subr.mxu0 0.0
        %1927 = vmatpush1.msra.mxu0 0.0
        %1928 = vmatprep.subr.mxu0 0.0
        %1929 = vmatpush1.msra.mxu0 0.0
        %1930 = vmatprep.subr.mxu0 0.0
        %1931 = vmatpush1.msra.mxu0 0.0
        %1932 = vmatprep.subr.mxu0 0.0
        %1933 = vmatpush1.msra.mxu0 0.0
        %1934 = vmatprep.subr.mxu0 0.0
        %1935 = vmatpush1.msra.mxu0 0.0
        %1936 = vmatprep.subr.mxu0 0.0
        %1937 = vmatpush1.msra.mxu0 0.0
        %1938 = vmatprep.subr.mxu0 0.0
        %1939 = vmatpush1.msra.mxu0 0.0
        %1940 = vmatprep.subr.mxu0 0.0
        %1941 = vmatpush1.msra.mxu0 0.0
        %1942 = vmatprep.subr.mxu0 0.0
        %1943 = vmatpush1.msra.mxu0 0.0
        %1944 = vmatprep.mubr.f32.mxu0 0.0
        %1945 = vmatmul.mubr.f32.gmra.mrb[0].mxu0 %v1799
        %v1946 = vpop.f32.mrb[0].mxu0
        %v1947 = vadd.f32 %v1794, %v1946
        %v1948 = vpop.f32.mrb[0].mxu0
        %v1949 = vadd.f32 %v1796, %v1948
        %1950 = vdwg.mxu0
        %v1952 = vsel %vm1132, %v1080, 0
        %v1955 = vsel %vm1136, %v1637, 0
        %v1958 = vsel %vm1136, %v1638, 0
        %v1961 = vsel %vm1136, %v1639, 0
        %v1964 = vsel %vm1136, %v1640, 0
        %1966 = vmatprep.subr.mxu0 %v1958
        %1967 = vmatpush1.msra.mxu0 %v1955
        %1968 = vmatprep.subr.mxu0 0.0
        %1969 = vmatpush1.msra.mxu0 0.0
        %1970 = vmatprep.subr.mxu0 0.0
        %1971 = vmatpush1.msra.mxu0 0.0
        %1972 = vmatprep.subr.mxu0 0.0
        %1973 = vmatpush1.msra.mxu0 0.0
        %1974 = vmatprep.subr.mxu0 0.0
        %1975 = vmatpush1.msra.mxu0 0.0
        %1976 = vmatprep.subr.mxu0 0.0
        %1977 = vmatpush1.msra.mxu0 0.0
        %1978 = vmatprep.subr.mxu0 0.0
        %1979 = vmatpush1.msra.mxu0 0.0
        %1980 = vmatprep.subr.mxu0 0.0
        %1981 = vmatpush1.msra.mxu0 0.0
        %1982 = vmatprep.subr.mxu0 0.0
        %1983 = vmatpush1.msra.mxu0 0.0
        %1984 = vmatprep.subr.mxu0 0.0
        %1985 = vmatpush1.msra.mxu0 0.0
        %1986 = vmatprep.subr.mxu0 0.0
        %1987 = vmatpush1.msra.mxu0 0.0
        %1988 = vmatprep.subr.mxu0 0.0
        %1989 = vmatpush1.msra.mxu0 0.0
        %1990 = vmatprep.subr.mxu0 0.0
        %1991 = vmatpush1.msra.mxu0 0.0
        %1992 = vmatprep.subr.mxu0 0.0
        %1993 = vmatpush1.msra.mxu0 0.0
        %1994 = vmatprep.subr.mxu0 0.0
        %1995 = vmatpush1.msra.mxu0 0.0
        %1996 = vmatprep.subr.mxu0 0.0
        %1997 = vmatpush1.msra.mxu0 0.0
        %1998 = vmatprep.subr.mxu0 0.0
        %1999 = vmatpush1.msra.mxu0 0.0
        %2000 = vmatprep.subr.mxu0 0.0
        %2001 = vmatpush1.msra.mxu0 0.0
        %2002 = vmatprep.subr.mxu0 0.0
        %2003 = vmatpush1.msra.mxu0 0.0
        %2004 = vmatprep.subr.mxu0 0.0
        %2005 = vmatpush1.msra.mxu0 0.0
        %2006 = vmatprep.subr.mxu0 0.0
        %2007 = vmatpush1.msra.mxu0 0.0
        %2008 = vmatprep.subr.mxu0 0.0
        %2009 = vmatpush1.msra.mxu0 0.0
        %2010 = vmatprep.subr.mxu0 0.0
        %2011 = vmatpush1.msra.mxu0 0.0
        %2012 = vmatprep.subr.mxu0 0.0
        %2013 = vmatpush1.msra.mxu0 0.0
        %2014 = vmatprep.subr.mxu0 0.0
        %2015 = vmatpush1.msra.mxu0 0.0
        %2016 = vmatprep.subr.mxu0 0.0
        %2017 = vmatpush1.msra.mxu0 0.0
        %2018 = vmatprep.subr.mxu0 0.0
        %2019 = vmatpush1.msra.mxu0 0.0
        %2020 = vmatprep.subr.mxu0 0.0
        %2021 = vmatpush1.msra.mxu0 0.0
        %2022 = vmatprep.subr.mxu0 0.0
        %2023 = vmatpush1.msra.mxu0 0.0
        %2024 = vmatprep.subr.mxu0 0.0
        %2025 = vmatpush1.msra.mxu0 0.0
        %2026 = vmatprep.subr.mxu0 0.0
        %2027 = vmatpush1.msra.mxu0 0.0
        %2028 = vmatprep.subr.mxu0 0.0
        %2029 = vmatpush1.msra.mxu0 0.0
        %2030 = vmatprep.mubr.f32.mxu0 0.0
        %2031 = vmatmul.mubr.f32.gmra.mrb[0].mxu0 %v1952
        %v2032 = vpop.f32.mrb[0].mxu0
        %v2033 = vadd.f32 0.0, %v2032
        %v2034 = vpop.f32.mrb[0].mxu0
        %v2035 = vadd.f32 0.0, %v2034
        %2036 = vdwg.mxu0
        %2037 = vmatprep.subr.mxu0 %v1964
        %2038 = vmatpush1.msra.mxu0 %v1961
        %2039 = vmatprep.subr.mxu0 0.0
        %2040 = vmatpush1.msra.mxu0 0.0
        %2041 = vmatprep.subr.mxu0 0.0
        %2042 = vmatpush1.msra.mxu0 0.0
        %2043 = vmatprep.subr.mxu0 0.0
        %2044 = vmatpush1.msra.mxu0 0.0
        %2045 = vmatprep.subr.mxu0 0.0
        %2046 = vmatpush1.msra.mxu0 0.0
        %2047 = vmatprep.subr.mxu0 0.0
        %2048 = vmatpush1.msra.mxu0 0.0
        %2049 = vmatprep.subr.mxu0 0.0
        %2050 = vmatpush1.msra.mxu0 0.0
        %2051 = vmatprep.subr.mxu0 0.0
        %2052 = vmatpush1.msra.mxu0 0.0
        %2053 = vmatprep.subr.mxu0 0.0
        %2054 = vmatpush1.msra.mxu0 0.0
        %2055 = vmatprep.subr.mxu0 0.0
        %2056 = vmatpush1.msra.mxu0 0.0
        %2057 = vmatprep.subr.mxu0 0.0
        %2058 = vmatpush1.msra.mxu0 0.0
        %2059 = vmatprep.subr.mxu0 0.0
        %2060 = vmatpush1.msra.mxu0 0.0
        %2061 = vmatprep.subr.mxu0 0.0
        %2062 = vmatpush1.msra.mxu0 0.0
        %2063 = vmatprep.subr.mxu0 0.0
        %2064 = vmatpush1.msra.mxu0 0.0
        %2065 = vmatprep.subr.mxu0 0.0
        %2066 = vmatpush1.msra.mxu0 0.0
        %2067 = vmatprep.subr.mxu0 0.0
        %2068 = vmatpush1.msra.mxu0 0.0
        %2069 = vmatprep.subr.mxu0 0.0
        %2070 = vmatpush1.msra.mxu0 0.0
        %2071 = vmatprep.subr.mxu0 0.0
        %2072 = vmatpush1.msra.mxu0 0.0
        %2073 = vmatprep.subr.mxu0 0.0
        %2074 = vmatpush1.msra.mxu0 0.0
        %2075 = vmatprep.subr.mxu0 0.0
        %2076 = vmatpush1.msra.mxu0 0.0
        %2077 = vmatprep.subr.mxu0 0.0
        %2078 = vmatpush1.msra.mxu0 0.0
        %2079 = vmatprep.subr.mxu0 0.0
        %2080 = vmatpush1.msra.mxu0 0.0
        %2081 = vmatprep.subr.mxu0 0.0
        %2082 = vmatpush1.msra.mxu0 0.0
        %2083 = vmatprep.subr.mxu0 0.0
        %2084 = vmatpush1.msra.mxu0 0.0
        %2085 = vmatprep.subr.mxu0 0.0
        %2086 = vmatpush1.msra.mxu0 0.0
        %2087 = vmatprep.subr.mxu0 0.0
        %2088 = vmatpush1.msra.mxu0 0.0
        %2089 = vmatprep.subr.mxu0 0.0
        %2090 = vmatpush1.msra.mxu0 0.0
        %2091 = vmatprep.subr.mxu0 0.0
        %2092 = vmatpush1.msra.mxu0 0.0
        %2093 = vmatprep.subr.mxu0 0.0
        %2094 = vmatpush1.msra.mxu0 0.0
        %2095 = vmatprep.subr.mxu0 0.0
        %2096 = vmatpush1.msra.mxu0 0.0
        %2097 = vmatprep.subr.mxu0 0.0
        %2098 = vmatpush1.msra.mxu0 0.0
        %2099 = vmatprep.subr.mxu0 0.0
        %2100 = vmatpush1.msra.mxu0 0.0
        %2101 = vmatprep.mubr.f32.mxu0 0.0
        %2102 = vmatmul.mubr.f32.gmra.mrb[0].mxu0 %v1952
        %v2103 = vpop.f32.mrb[0].mxu0
        %v2104 = vadd.f32 0.0, %v2103
        %v2105 = vpop.f32.mrb[0].mxu0
        %v2106 = vadd.f32 0.0, %v2105
        %2107 = vdwg.mxu0
        %v2108 = vadd.f32 %v1876, %v2033
        %v2109 = vadd.f32 %v1878, %v2035
        %v2110 = vadd.f32 %v1947, %v2104
        %v2111 = vadd.f32 %v1949, %v2106
        %v2112 = vadd.f32 %v1605, %v2108
        %v2113 = vadd.f32 %v1606, %v2109
        %v2114 = vadd.f32 %v1607, %v2110
        %v2115 = vadd.f32 %v1608, %v2111
        %2117 = vset.pattern.permute.xlu0 0
        %2118 = vperm.xlu0 %2117, %v1081
        %v2119 = vpop.permute.xlu0 %2118
        %v2121 = vadd.f32 %v2112, %v2119
        %v2122 = vadd.f32 %v2113, %v2119
        %v2123 = vadd.f32 %v2114, %v2119
        %v2124 = vadd.f32 %v2115, %v2119
        %v2125 = vmax.f32 %v2121, 0.0
        %v2126 = vmax.f32 %v2122, 0.0
        %v2127 = vmax.f32 %v2123, 0.0
        %v2128 = vmax.f32 %v2124, 0.0
        %v2129 = vld [vmem:[%s9] sm:$0xf]
        %v2130 = vld [vmem:[%s9 + $0x4] sm:$0xf]
        %v2131 = vld [vmem:[%s9 + $0x8] sm:$0xf]
        %v2132 = vld [vmem:[%s10] sm:$0xf]
        %2133 = vrot.lane.b32.xlu0 %v2125, 1
        %v2134 = vpop.permute.xlu0 %2133
        %2135 = vrot.lane.b32.xlu0 %v2126, 1
        %v2136 = vpop.permute.xlu0 %2135
        %2137 = vrot.lane.b32.xlu0 %v2127, 1
        %v2138 = vpop.permute.xlu0 %2137
        %2139 = vrot.lane.b32.xlu0 %v2128, 1
        %v2140 = vpop.permute.xlu0 %2139
        %v2141 = vsel %vm1090, %v2138, %v2140
        %v2142 = vsel %vm1090, %v2136, %v2138
        %v2143 = vsel %vm1090, %v2134, %v2136
        %v2144 = vsel %vm1090, %v2140, %v2134
        %v2145 = vsel %vm1099, %v2144, 0.0
        %v2146 = vsel %vm1100, %v2143, 0.0
        %v2147 = vsel %vm1101, %v2142, 0.0
        %v2148 = vsel %vm1102, %v2141, 0.0
        %2149 = vrot.lane.b32.xlu0 %v2125, 127
        %v2150 = vpop.permute.xlu0 %2149
        %2151 = vrot.lane.b32.xlu0 %v2126, 127
        %v2152 = vpop.permute.xlu0 %2151
        %2153 = vrot.lane.b32.xlu0 %v2127, 127
        %v2154 = vpop.permute.xlu0 %2153
        %2155 = vrot.lane.b32.xlu0 %v2128, 127
        %v2156 = vpop.permute.xlu0 %2155
        %v2157 = vsel %vm1115, %v2154, %v2156
        %v2158 = vsel %vm1115, %v2152, %v2154
        %v2159 = vsel %vm1115, %v2150, %v2152
        %v2160 = vsel %vm1115, %v2156, %v2150
        %v2161 = vsel %vm1124, %v2159, 0.0
        %v2162 = vsel %vm1125, %v2158, 0.0
        %v2163 = vsel %vm1126, %v2157, 0.0
        %v2164 = vsel %vm1127, %v2160, 0.0
        %v2166 = vsel %vm1132, %v2129, 0
        %v2169 = vsel %vm1136, %v2145, 0
        %v2172 = vsel %vm1136, %v2146, 0
        %v2175 = vsel %vm1136, %v2147, 0
        %v2178 = vsel %vm1136, %v2148, 0
        %2180 = vmatprep.subr.mxu0 %v2172
        %2181 = vmatpush1.msra.mxu0 %v2169
        %2182 = vmatprep.subr.mxu0 0.0
        %2183 = vmatpush1.msra.mxu0 0.0
        %2184 = vmatprep.subr.mxu0 0.0
        %2185 = vmatpush1.msra.mxu0 0.0
        %2186 = vmatprep.subr.mxu0 0.0
        %2187 = vmatpush1.msra.mxu0 0.0
        %2188 = vmatprep.subr.mxu0 0.0
        %2189 = vmatpush1.msra.mxu0 0.0
        %2190 = vmatprep.subr.mxu0 0.0
        %2191 = vmatpush1.msra.mxu0 0.0
        %2192 = vmatprep.subr.mxu0 0.0
        %2193 = vmatpush1.msra.mxu0 0.0
        %2194 = vmatprep.subr.mxu0 0.0
        %2195 = vmatpush1.msra.mxu0 0.0
        %2196 = vmatprep.subr.mxu0 0.0
        %2197 = vmatpush1.msra.mxu0 0.0
        %2198 = vmatprep.subr.mxu0 0.0
        %2199 = vmatpush1.msra.mxu0 0.0
        %2200 = vmatprep.subr.mxu0 0.0
        %2201 = vmatpush1.msra.mxu0 0.0
        %2202 = vmatprep.subr.mxu0 0.0
        %2203 = vmatpush1.msra.mxu0 0.0
        %2204 = vmatprep.subr.mxu0 0.0
        %2205 = vmatpush1.msra.mxu0 0.0
        %2206 = vmatprep.subr.mxu0 0.0
        %2207 = vmatpush1.msra.mxu0 0.0
        %2208 = vmatprep.subr.mxu0 0.0
        %2209 = vmatpush1.msra.mxu0 0.0
        %2210 = vmatprep.subr.mxu0 0.0
        %2211 = vmatpush1.msra.mxu0 0.0
        %2212 = vmatprep.subr.mxu0 0.0
        %2213 = vmatpush1.msra.mxu0 0.0
        %2214 = vmatprep.subr.mxu0 0.0
        %2215 = vmatpush1.msra.mxu0 0.0
        %2216 = vmatprep.subr.mxu0 0.0
        %2217 = vmatpush1.msra.mxu0 0.0
        %2218 = vmatprep.subr.mxu0 0.0
        %2219 = vmatpush1.msra.mxu0 0.0
        %2220 = vmatprep.subr.mxu0 0.0
        %2221 = vmatpush1.msra.mxu0 0.0
        %2222 = vmatprep.subr.mxu0 0.0
        %2223 = vmatpush1.msra.mxu0 0.0
        %2224 = vmatprep.subr.mxu0 0.0
        %2225 = vmatpush1.msra.mxu0 0.0
        %2226 = vmatprep.subr.mxu0 0.0
        %2227 = vmatpush1.msra.mxu0 0.0
        %2228 = vmatprep.subr.mxu0 0.0
        %2229 = vmatpush1.msra.mxu0 0.0
        %2230 = vmatprep.subr.mxu0 0.0
        %2231 = vmatpush1.msra.mxu0 0.0
        %2232 = vmatprep.subr.mxu0 0.0
        %2233 = vmatpush1.msra.mxu0 0.0
        %2234 = vmatprep.subr.mxu0 0.0
        %2235 = vmatpush1.msra.mxu0 0.0
        %2236 = vmatprep.subr.mxu0 0.0
        %2237 = vmatpush1.msra.mxu0 0.0
        %2238 = vmatprep.subr.mxu0 0.0
        %2239 = vmatpush1.msra.mxu0 0.0
        %2240 = vmatprep.subr.mxu0 0.0
        %2241 = vmatpush1.msra.mxu0 0.0
        %2242 = vmatprep.subr.mxu0 0.0
        %2243 = vmatpush1.msra.mxu0 0.0
        %2244 = vmatprep.mubr.f32.mxu0 0.0
        %2245 = vmatmul.mubr.f32.gmra.mrb[0].mxu0 %v2166
        %v2246 = vpop.f32.mrb[0].mxu0
        %v2247 = vadd.f32 0.0, %v2246
        %v2248 = vpop.f32.mrb[0].mxu0
        %v2249 = vadd.f32 0.0, %v2248
        %2250 = vdwg.mxu0
        %2251 = vmatprep.subr.mxu0 %v2178
        %2252 = vmatpush1.msra.mxu0 %v2175
        %2253 = vmatprep.subr.mxu0 0.0
        %2254 = vmatpush1.msra.mxu0 0.0
        %2255 = vmatprep.subr.mxu0 0.0
        %2256 = vmatpush1.msra.mxu0 0.0
        %2257 = vmatprep.subr.mxu0 0.0
        %2258 = vmatpush1.msra.mxu0 0.0
        %2259 = vmatprep.subr.mxu0 0.0
        %2260 = vmatpush1.msra.mxu0 0.0
        %2261 = vmatprep.subr.mxu0 0.0
        %2262 = vmatpush1.msra.mxu0 0.0
        %2263 = vmatprep.subr.mxu0 0.0
        %2264 = vmatpush1.msra.mxu0 0.0
        %2265 = vmatprep.subr.mxu0 0.0
        %2266 = vmatpush1.msra.mxu0 0.0
        %2267 = vmatprep.subr.mxu0 0.0
        %2268 = vmatpush1.msra.mxu0 0.0
        %2269 = vmatprep.subr.mxu0 0.0
        %2270 = vmatpush1.msra.mxu0 0.0
        %2271 = vmatprep.subr.mxu0 0.0
        %2272 = vmatpush1.msra.mxu0 0.0
        %2273 = vmatprep.subr.mxu0 0.0
        %2274 = vmatpush1.msra.mxu0 0.0
        %2275 = vmatprep.subr.mxu0 0.0
        %2276 = vmatpush1.msra.mxu0 0.0
        %2277 = vmatprep.subr.mxu0 0.0
        %2278 = vmatpush1.msra.mxu0 0.0
        %2279 = vmatprep.subr.mxu0 0.0
        %2280 = vmatpush1.msra.mxu0 0.0
        %2281 = vmatprep.subr.mxu0 0.0
        %2282 = vmatpush1.msra.mxu0 0.0
        %2283 = vmatprep.subr.mxu0 0.0
        %2284 = vmatpush1.msra.mxu0 0.0
        %2285 = vmatprep.subr.mxu0 0.0
        %2286 = vmatpush1.msra.mxu0 0.0
        %2287 = vmatprep.subr.mxu0 0.0
        %2288 = vmatpush1.msra.mxu0 0.0
        %2289 = vmatprep.subr.mxu0 0.0
        %2290 = vmatpush1.msra.mxu0 0.0
        %2291 = vmatprep.subr.mxu0 0.0
        %2292 = vmatpush1.msra.mxu0 0.0
        %2293 = vmatprep.subr.mxu0 0.0
        %2294 = vmatpush1.msra.mxu0 0.0
        %2295 = vmatprep.subr.mxu0 0.0
        %2296 = vmatpush1.msra.mxu0 0.0
        %2297 = vmatprep.subr.mxu0 0.0
        %2298 = vmatpush1.msra.mxu0 0.0
        %2299 = vmatprep.subr.mxu0 0.0
        %2300 = vmatpush1.msra.mxu0 0.0
        %2301 = vmatprep.subr.mxu0 0.0
        %2302 = vmatpush1.msra.mxu0 0.0
        %2303 = vmatprep.subr.mxu0 0.0
        %2304 = vmatpush1.msra.mxu0 0.0
        %2305 = vmatprep.subr.mxu0 0.0
        %2306 = vmatpush1.msra.mxu0 0.0
        %2307 = vmatprep.subr.mxu0 0.0
        %2308 = vmatpush1.msra.mxu0 0.0
        %2309 = vmatprep.subr.mxu0 0.0
        %2310 = vmatpush1.msra.mxu0 0.0
        %2311 = vmatprep.subr.mxu0 0.0
        %2312 = vmatpush1.msra.mxu0 0.0
        %2313 = vmatprep.subr.mxu0 0.0
        %2314 = vmatpush1.msra.mxu0 0.0
        %2315 = vmatprep.mubr.f32.mxu0 0.0
        %2316 = vmatmul.mubr.f32.gmra.mrb[0].mxu0 %v2166
        %v2317 = vpop.f32.mrb[0].mxu0
        %v2318 = vadd.f32 0.0, %v2317
        %v2319 = vpop.f32.mrb[0].mxu0
        %v2320 = vadd.f32 0.0, %v2319
        %2321 = vdwg.mxu0
        %v2323 = vsel %vm1132, %v2130, 0
        %v2326 = vsel %vm1136, %v2125, 0
        %v2329 = vsel %vm1136, %v2126, 0
        %v2332 = vsel %vm1136, %v2127, 0
        %v2335 = vsel %vm1136, %v2128, 0
        %2337 = vmatprep.subr.mxu0 %v2329
        %2338 = vmatpush1.msra.mxu0 %v2326
        %2339 = vmatprep.subr.mxu0 0.0
        %2340 = vmatpush1.msra.mxu0 0.0
        %2341 = vmatprep.subr.mxu0 0.0
        %2342 = vmatpush1.msra.mxu0 0.0
        %2343 = vmatprep.subr.mxu0 0.0
        %2344 = vmatpush1.msra.mxu0 0.0
        %2345 = vmatprep.subr.mxu0 0.0
        %2346 = vmatpush1.msra.mxu0 0.0
        %2347 = vmatprep.subr.mxu0 0.0
        %2348 = vmatpush1.msra.mxu0 0.0
        %2349 = vmatprep.subr.mxu0 0.0
        %2350 = vmatpush1.msra.mxu0 0.0
        %2351 = vmatprep.subr.mxu0 0.0
        %2352 = vmatpush1.msra.mxu0 0.0
        %2353 = vmatprep.subr.mxu0 0.0
        %2354 = vmatpush1.msra.mxu0 0.0
        %2355 = vmatprep.subr.mxu0 0.0
        %2356 = vmatpush1.msra.mxu0 0.0
        %2357 = vmatprep.subr.mxu0 0.0
        %2358 = vmatpush1.msra.mxu0 0.0
        %2359 = vmatprep.subr.mxu0 0.0
        %2360 = vmatpush1.msra.mxu0 0.0
        %2361 = vmatprep.subr.mxu0 0.0
        %2362 = vmatpush1.msra.mxu0 0.0
        %2363 = vmatprep.subr.mxu0 0.0
        %2364 = vmatpush1.msra.mxu0 0.0
        %2365 = vmatprep.subr.mxu0 0.0
        %2366 = vmatpush1.msra.mxu0 0.0
        %2367 = vmatprep.subr.mxu0 0.0
        %2368 = vmatpush1.msra.mxu0 0.0
        %2369 = vmatprep.subr.mxu0 0.0
        %2370 = vmatpush1.msra.mxu0 0.0
        %2371 = vmatprep.subr.mxu0 0.0
        %2372 = vmatpush1.msra.mxu0 0.0
        %2373 = vmatprep.subr.mxu0 0.0
        %2374 = vmatpush1.msra.mxu0 0.0
        %2375 = vmatprep.subr.mxu0 0.0
        %2376 = vmatpush1.msra.mxu0 0.0
        %2377 = vmatprep.subr.mxu0 0.0
        %2378 = vmatpush1.msra.mxu0 0.0
        %2379 = vmatprep.subr.mxu0 0.0
        %2380 = vmatpush1.msra.mxu0 0.0
        %2381 = vmatprep.subr.mxu0 0.0
        %2382 = vmatpush1.msra.mxu0 0.0
        %2383 = vmatprep.subr.mxu0 0.0
        %2384 = vmatpush1.msra.mxu0 0.0
        %2385 = vmatprep.subr.mxu0 0.0
        %2386 = vmatpush1.msra.mxu0 0.0
        %2387 = vmatprep.subr.mxu0 0.0
        %2388 = vmatpush1.msra.mxu0 0.0
        %2389 = vmatprep.subr.mxu0 0.0
        %2390 = vmatpush1.msra.mxu0 0.0
        %2391 = vmatprep.subr.mxu0 0.0
        %2392 = vmatpush1.msra.mxu0 0.0
        %2393 = vmatprep.subr.mxu0 0.0
        %2394 = vmatpush1.msra.mxu0 0.0
        %2395 = vmatprep.subr.mxu0 0.0
        %2396 = vmatpush1.msra.mxu0 0.0
        %2397 = vmatprep.subr.mxu0 0.0
        %2398 = vmatpush1.msra.mxu0 0.0
        %2399 = vmatprep.subr.mxu0 0.0
        %2400 = vmatpush1.msra.mxu0 0.0
        %2401 = vmatprep.mubr.f32.mxu0 0.0
        %2402 = vmatmul.mubr.f32.gmra.mrb[0].mxu0 %v2323
        %v2403 = vpop.f32.mrb[0].mxu0
        %v2404 = vadd.f32 %v2247, %v2403
        %v2405 = vpop.f32.mrb[0].mxu0
        %v2406 = vadd.f32 %v2249, %v2405
        %2407 = vdwg.mxu0
        %2408 = vmatprep.subr.mxu0 %v2335
        %2409 = vmatpush1.msra.mxu0 %v2332
        %2410 = vmatprep.subr.mxu0 0.0
        %2411 = vmatpush1.msra.mxu0 0.0
        %2412 = vmatprep.subr.mxu0 0.0
        %2413 = vmatpush1.msra.mxu0 0.0
        %2414 = vmatprep.subr.mxu0 0.0
        %2415 = vmatpush1.msra.mxu0 0.0
        %2416 = vmatprep.subr.mxu0 0.0
        %2417 = vmatpush1.msra.mxu0 0.0
        %2418 = vmatprep.subr.mxu0 0.0
        %2419 = vmatpush1.msra.mxu0 0.0
        %2420 = vmatprep.subr.mxu0 0.0
        %2421 = vmatpush1.msra.mxu0 0.0
        %2422 = vmatprep.subr.mxu0 0.0
        %2423 = vmatpush1.msra.mxu0 0.0
        %2424 = vmatprep.subr.mxu0 0.0
        %2425 = vmatpush1.msra.mxu0 0.0
        %2426 = vmatprep.subr.mxu0 0.0
        %2427 = vmatpush1.msra.mxu0 0.0
        %2428 = vmatprep.subr.mxu0 0.0
        %2429 = vmatpush1.msra.mxu0 0.0
        %2430 = vmatprep.subr.mxu0 0.0
        %2431 = vmatpush1.msra.mxu0 0.0
        %2432 = vmatprep.subr.mxu0 0.0
        %2433 = vmatpush1.msra.mxu0 0.0
        %2434 = vmatprep.subr.mxu0 0.0
        %2435 = vmatpush1.msra.mxu0 0.0
        %2436 = vmatprep.subr.mxu0 0.0
        %2437 = vmatpush1.msra.mxu0 0.0
        %2438 = vmatprep.subr.mxu0 0.0
        %2439 = vmatpush1.msra.mxu0 0.0
        %2440 = vmatprep.subr.mxu0 0.0
        %2441 = vmatpush1.msra.mxu0 0.0
        %2442 = vmatprep.subr.mxu0 0.0
        %2443 = vmatpush1.msra.mxu0 0.0
        %2444 = vmatprep.subr.mxu0 0.0
        %2445 = vmatpush1.msra.mxu0 0.0
        %2446 = vmatprep.subr.mxu0 0.0
        %2447 = vmatpush1.msra.mxu0 0.0
        %2448 = vmatprep.subr.mxu0 0.0
        %2449 = vmatpush1.msra.mxu0 0.0
        %2450 = vmatprep.subr.mxu0 0.0
        %2451 = vmatpush1.msra.mxu0 0.0
        %2452 = vmatprep.subr.mxu0 0.0
        %2453 = vmatpush1.msra.mxu0 0.0
        %2454 = vmatprep.subr.mxu0 0.0
        %2455 = vmatpush1.msra.mxu0 0.0
        %2456 = vmatprep.subr.mxu0 0.0
        %2457 = vmatpush1.msra.mxu0 0.0
        %2458 = vmatprep.subr.mxu0 0.0
        %2459 = vmatpush1.msra.mxu0 0.0
        %2460 = vmatprep.subr.mxu0 0.0
        %2461 = vmatpush1.msra.mxu0 0.0
        %2462 = vmatprep.subr.mxu0 0.0
        %2463 = vmatpush1.msra.mxu0 0.0
        %2464 = vmatprep.subr.mxu0 0.0
        %2465 = vmatpush1.msra.mxu0 0.0
        %2466 = vmatprep.subr.mxu0 0.0
        %2467 = vmatpush1.msra.mxu0 0.0
        %2468 = vmatprep.subr.mxu0 0.0
        %2469 = vmatpush1.msra.mxu0 0.0
        %2470 = vmatprep.subr.mxu0 0.0
        %2471 = vmatpush1.msra.mxu0 0.0
        %2472 = vmatprep.mubr.f32.mxu0 0.0
        %2473 = vmatmul.mubr.f32.gmra.mrb[0].mxu0 %v2323
        %v2474 = vpop.f32.mrb[0].mxu0
        %v2475 = vadd.f32 %v2318, %v2474
        %v2476 = vpop.f32.mrb[0].mxu0
        %v2477 = vadd.f32 %v2320, %v2476
        %2478 = vdwg.mxu0
        %v2480 = vsel %vm1132, %v2131, 0
        %v2483 = vsel %vm1136, %v2161, 0
        %v2486 = vsel %vm1136, %v2162, 0
        %v2489 = vsel %vm1136, %v2163, 0
        %v2492 = vsel %vm1136, %v2164, 0
        %2494 = vmatprep.subr.mxu0 %v2486
        %2495 = vmatpush1.msra.mxu0 %v2483
        %2496 = vmatprep.subr.mxu0 0.0
        %2497 = vmatpush1.msra.mxu0 0.0
        %2498 = vmatprep.subr.mxu0 0.0
        %2499 = vmatpush1.msra.mxu0 0.0
        %2500 = vmatprep.subr.mxu0 0.0
        %2501 = vmatpush1.msra.mxu0 0.0
        %2502 = vmatprep.subr.mxu0 0.0
        %2503 = vmatpush1.msra.mxu0 0.0
        %2504 = vmatprep.subr.mxu0 0.0
        %2505 = vmatpush1.msra.mxu0 0.0
        %2506 = vmatprep.subr.mxu0 0.0
        %2507 = vmatpush1.msra.mxu0 0.0
        %2508 = vmatprep.subr.mxu0 0.0
        %2509 = vmatpush1.msra.mxu0 0.0
        %2510 = vmatprep.subr.mxu0 0.0
        %2511 = vmatpush1.msra.mxu0 0.0
        %2512 = vmatprep.subr.mxu0 0.0
        %2513 = vmatpush1.msra.mxu0 0.0
        %2514 = vmatprep.subr.mxu0 0.0
        %2515 = vmatpush1.msra.mxu0 0.0
        %2516 = vmatprep.subr.mxu0 0.0
        %2517 = vmatpush1.msra.mxu0 0.0
        %2518 = vmatprep.subr.mxu0 0.0
        %2519 = vmatpush1.msra.mxu0 0.0
        %2520 = vmatprep.subr.mxu0 0.0
        %2521 = vmatpush1.msra.mxu0 0.0
        %2522 = vmatprep.subr.mxu0 0.0
        %2523 = vmatpush1.msra.mxu0 0.0
        %2524 = vmatprep.subr.mxu0 0.0
        %2525 = vmatpush1.msra.mxu0 0.0
        %2526 = vmatprep.subr.mxu0 0.0
        %2527 = vmatpush1.msra.mxu0 0.0
        %2528 = vmatprep.subr.mxu0 0.0
        %2529 = vmatpush1.msra.mxu0 0.0
        %2530 = vmatprep.subr.mxu0 0.0
        %2531 = vmatpush1.msra.mxu0 0.0
        %2532 = vmatprep.subr.mxu0 0.0
        %2533 = vmatpush1.msra.mxu0 0.0
        %2534 = vmatprep.subr.mxu0 0.0
        %2535 = vmatpush1.msra.mxu0 0.0
        %2536 = vmatprep.subr.mxu0 0.0
        %2537 = vmatpush1.msra.mxu0 0.0
        %2538 = vmatprep.subr.mxu0 0.0
        %2539 = vmatpush1.msra.mxu0 0.0
        %2540 = vmatprep.subr.mxu0 0.0
        %2541 = vmatpush1.msra.mxu0 0.0
        %2542 = vmatprep.subr.mxu0 0.0
        %2543 = vmatpush1.msra.mxu0 0.0
        %2544 = vmatprep.subr.mxu0 0.0
        %2545 = vmatpush1.msra.mxu0 0.0
        %2546 = vmatprep.subr.mxu0 0.0
        %2547 = vmatpush1.msra.mxu0 0.0
        %2548 = vmatprep.subr.mxu0 0.0
        %2549 = vmatpush1.msra.mxu0 0.0
        %2550 = vmatprep.subr.mxu0 0.0
        %2551 = vmatpush1.msra.mxu0 0.0
        %2552 = vmatprep.subr.mxu0 0.0
        %2553 = vmatpush1.msra.mxu0 0.0
        %2554 = vmatprep.subr.mxu0 0.0
        %2555 = vmatpush1.msra.mxu0 0.0
        %2556 = vmatprep.subr.mxu0 0.0
        %2557 = vmatpush1.msra.mxu0 0.0
        %2558 = vmatprep.mubr.f32.mxu0 0.0
        %2559 = vmatmul.mubr.f32.gmra.mrb[0].mxu0 %v2480
        %v2560 = vpop.f32.mrb[0].mxu0
        %v2561 = vadd.f32 0.0, %v2560
        %v2562 = vpop.f32.mrb[0].mxu0
        %v2563 = vadd.f32 0.0, %v2562
        %2564 = vdwg.mxu0
        %2565 = vmatprep.subr.mxu0 %v2492
        %2566 = vmatpush1.msra.mxu0 %v2489
        %2567 = vmatprep.subr.mxu0 0.0
        %2568 = vmatpush1.msra.mxu0 0.0
        %2569 = vmatprep.subr.mxu0 0.0
        %2570 = vmatpush1.msra.mxu0 0.0
        %2571 = vmatprep.subr.mxu0 0.0
        %2572 = vmatpush1.msra.mxu0 0.0
        %2573 = vmatprep.subr.mxu0 0.0
        %2574 = vmatpush1.msra.mxu0 0.0
        %2575 = vmatprep.subr.mxu0 0.0
        %2576 = vmatpush1.msra.mxu0 0.0
        %2577 = vmatprep.subr.mxu0 0.0
        %2578 = vmatpush1.msra.mxu0 0.0
        %2579 = vmatprep.subr.mxu0 0.0
        %2580 = vmatpush1.msra.mxu0 0.0
        %2581 = vmatprep.subr.mxu0 0.0
        %2582 = vmatpush1.msra.mxu0 0.0
        %2583 = vmatprep.subr.mxu0 0.0
        %2584 = vmatpush1.msra.mxu0 0.0
        %2585 = vmatprep.subr.mxu0 0.0
        %2586 = vmatpush1.msra.mxu0 0.0
        %2587 = vmatprep.subr.mxu0 0.0
        %2588 = vmatpush1.msra.mxu0 0.0
        %2589 = vmatprep.subr.mxu0 0.0
        %2590 = vmatpush1.msra.mxu0 0.0
        %2591 = vmatprep.subr.mxu0 0.0
        %2592 = vmatpush1.msra.mxu0 0.0
        %2593 = vmatprep.subr.mxu0 0.0
        %2594 = vmatpush1.msra.mxu0 0.0
        %2595 = vmatprep.subr.mxu0 0.0
        %2596 = vmatpush1.msra.mxu0 0.0
        %2597 = vmatprep.subr.mxu0 0.0
        %2598 = vmatpush1.msra.mxu0 0.0
        %2599 = vmatprep.subr.mxu0 0.0
        %2600 = vmatpush1.msra.mxu0 0.0
        %2601 = vmatprep.subr.mxu0 0.0
        %2602 = vmatpush1.msra.mxu0 0.0
        %2603 = vmatprep.subr.mxu0 0.0
        %2604 = vmatpush1.msra.mxu0 0.0
        %2605 = vmatprep.subr.mxu0 0.0
        %2606 = vmatpush1.msra.mxu0 0.0
        %2607 = vmatprep.subr.mxu0 0.0
        %2608 = vmatpush1.msra.mxu0 0.0
        %2609 = vmatprep.subr.mxu0 0.0
        %2610 = vmatpush1.msra.mxu0 0.0
        %2611 = vmatprep.subr.mxu0 0.0
        %2612 = vmatpush1.msra.mxu0 0.0
        %2613 = vmatprep.subr.mxu0 0.0
        %2614 = vmatpush1.msra.mxu0 0.0
        %2615 = vmatprep.subr.mxu0 0.0
        %2616 = vmatpush1.msra.mxu0 0.0
        %2617 = vmatprep.subr.mxu0 0.0
        %2618 = vmatpush1.msra.mxu0 0.0
        %2619 = vmatprep.subr.mxu0 0.0
        %2620 = vmatpush1.msra.mxu0 0.0
        %2621 = vmatprep.subr.mxu0 0.0
        %2622 = vmatpush1.msra.mxu0 0.0
        %2623 = vmatprep.subr.mxu0 0.0
        %2624 = vmatpush1.msra.mxu0 0.0
        %2625 = vmatprep.subr.mxu0 0.0
        %2626 = vmatpush1.msra.mxu0 0.0
        %2627 = vmatprep.subr.mxu0 0.0
        %2628 = vmatpush1.msra.mxu0 0.0
        %2629 = vmatprep.mubr.f32.mxu0 0.0
        %2630 = vmatmul.mubr.f32.gmra.mrb[0].mxu0 %v2480
        %v2631 = vpop.f32.mrb[0].mxu0
        %v2632 = vadd.f32 0.0, %v2631
        %v2633 = vpop.f32.mrb[0].mxu0
        %v2634 = vadd.f32 0.0, %v2633
        %2635 = vdwg.mxu0
        %v2636 = vadd.f32 %v2404, %v2561
        %v2637 = vadd.f32 %v2406, %v2563
        %v2638 = vadd.f32 %v2475, %v2632
        %v2639 = vadd.f32 %v2477, %v2634
        %2641 = vset.pattern.permute.xlu0 0
        %2642 = vperm.xlu0 %2641, %v2132
        %v2643 = vpop.permute.xlu0 %2642
        %v2645 = vadd.f32 %v2636, %v2643
        %v2646 = vadd.f32 %v2637, %v2643
        %v2647 = vadd.f32 %v2638, %v2643
        %v2648 = vadd.f32 %v2639, %v2643
        %v2649 = vmax.f32 %v2645, 0.0
        %v2650 = vmax.f32 %v2646, 0.0
        %v2651 = vmax.f32 %v2647, 0.0
        %v2652 = vmax.f32 %v2648, 0.0
        %v2655 = vcombine.low %v2649, %v2650
        %2657 = vst [vmem:[%s488] sm:$0xff] %v2655
        %v2660 = vcombine.low %v2651, %v2652
        %s2662 = scalar_lea.vmem %s488, 8 [#allocation11]
        %2663 = vst [vmem:[%s2662] sm:$0xff] %v2660
        %s2664 = sand.u32 %s281, 1
        %s2665 = scalar_lea.sflag [#allocation4], %s2664
        %s2666 = sand.u32 %s281, 1
        %s2667 = smul.addr %s2666, 16
        %s2668 = scalar_lea.vmem [#allocation11], %s2667
        // Predicated region
        $region85: #{tpu_custom_call.1} parent=63 // pred_check
          %p2669 = pneg %p291
        $region86: #{tpu_custom_call.1} parent=63 // pred_check_branch
          %2671 = sbr.rel (%p2669) target = $region88
        $region87: #{tpu_custom_call.1} parent=63 // pred_region
          %s2672 = smul.u32 2, %s32
          %s2674 = ssub.s32 256, 256
          %2675 = vsyncadd %s2665, %s2674
          %s2676 = smul.addr %s2672, 2
          %s2677 = smul.addr %s2676, 64
          %s2678 = scalar_lea.hbm %s11, %s2677
          %s2679 = sshll.u32 %s2668, 4
          %s2680 = int_to_ptr.vmem [resolvable:$true] %s2679
          %2685 = dma.vmem_to_hbm [thread:$0]  %s2680, 256, %s2678, %s2665, 128, 128, 8
        $region88: #{tpu_custom_call.1} parent=63 // pred_fallthru
          _
      $region64: #{tpu_custom_call.1} parent=5 // pred_fallthru
        _
      %p2686 = scmp.le.s32.totalorder 2, %s27
      // Predicated region
      $region89: #{tpu_custom_call.1} parent=5 // pred_check
        %p2687 = pneg %p2686
      $region90: #{tpu_custom_call.1} parent=5 // pred_check_branch
        %2689 = sbr.rel (%p2687) target = $region92
      $region91: #{tpu_custom_call.1} parent=5 // pred_region
        %s2690 = ssub.s32 %s27, 2
        // Predicated region
        $region93: #{tpu_custom_call.1} parent=91 // pred_check
          %p2691 = pneg %p297
        $region94: #{tpu_custom_call.1} parent=91 // pred_check_branch
          %2693 = sbr.rel (%p2691) target = $region96
        $region95: #{tpu_custom_call.1} parent=91 // pred_region
          %s2694 = sand.u32 %s282, 1
          %s2695 = scalar_lea.sflag [#allocation4], %s2694
          %s2696 = sand.u32 %s282, 1
          %s2697 = smul.addr %s2696, 16
          %s2698 = scalar_lea.vmem [#allocation11], %s2697
          %2699 = dma.done %s2695, 256
        $region96: #{tpu_custom_call.1} parent=91 // pred_fallthru
          _
      $region92: #{tpu_custom_call.1} parent=5 // pred_fallthru
        _
    $region6: #{tpu_custom_call.1} parent=1 // loop_footer
      %s31 = sadd.s32 1, %s27
    $region7: #{tpu_custom_call.1} parent=1 // loop_footer_branch
      %26 = sbr.rel target = $region3
    $region8: #{tpu_custom_call.1} parent=1 // loop_exit
      _
    %2700 = vsyncpa [#allocation3], 1
    %s2701 = scalar_lea.sflag [#allocation3], 1
    %2702 = vsyncpa %s2701, 1
    %2703 = vsyncpa [#allocation6], 1
    %s2704 = scalar_lea.sflag [#allocation6], 1
    %2705 = vsyncpa %s2704, 1
    %2706 = vsyncpa [#allocation9], 1
    %2707 = vsyncpa [#allocation4], 1
    %s2708 = scalar_lea.sflag [#allocation4], 1
    %2709 = vsyncpa %s2708, 1

</llo_original>
